<compile_context>
chip_gen: v7x
topology: tpu7x:2x2x1
jax: 0.10.0
libtpu: 0.0.40
codegen_flags: <defaults>
</compile_context>

<pallas_src>
import functools

import jax
import jax.numpy as jnp
from jax import lax
from jax.experimental import pallas as pl
from jax.experimental.pallas import tpu as pltpu

_EPS = 1e-5
_VMEM_LIMIT = 48 * 1024 * 1024  # stay under v7x's 64 MiB physical VMEM


# ----------------------------- in-kernel helpers -----------------------------

def _write_padded(pad_ref, interior, Wp, Mrows):
    """Write `interior` (Mrows, C) into the flat padded buffer; zero only the borders."""
    C = pad_ref.shape[1]
    zb = jnp.zeros((Wp + 1, C), pad_ref.dtype)
    pad_ref[pl.ds(0, Wp + 1), :] = zb                       # top pad row + first left pad
    pad_ref[pl.ds(Wp + 1 + Mrows, Wp + 1), :] = zb          # tail of bottom pad row (+2 slack rows)
    pad_ref[pl.ds(Wp + 1, Mrows), :] = interior             # interior (zero cols baked into rows)


def _shifted_conv3x3(pad_ref, w_ref, h_ref, Wp, Mrows):
    """3x3 conv = 9 shifted contiguous slabs, bf16 MXU matmuls, accumulate in VMEM out block."""
    for t in range(9):
        off = (t // 3) * Wp + (t % 3)
        lhs = pad_ref[pl.ds(off, Mrows), :].astype(jnp.bfloat16)     # (Mrows, Cin) bf16
        contrib = jnp.dot(lhs, w_ref[t], preferred_element_type=jnp.float32)
        if t == 0:
            h_ref[0] = contrib
        else:
            h_ref[0] += contrib


def _bn_partial_stats(h_ref, m_ref, s_ref, q_ref):
    """Per-image channel sum / sum-of-squares over valid pixels (mask kills the 2 pad cols)."""
    hm = h_ref[0] * m_ref[0]
    s_ref[0] = jnp.sum(hm, axis=0, keepdims=True)
    q_ref[0] = jnp.sum(hm * hm, axis=0, keepdims=True)


# --------------------------------- kernels -----------------------------------

def _pool_conv_kernel(Wp, Mrows,
                      t00, t01, t10, t11, w_ref, m_ref,
                      h_ref, s_ref, q_ref, pad_ref):
    """2x2 maxpool (4 taps) + conv1 + BN1 partial statistics, one image per grid step."""
    pooled = jnp.maximum(jnp.maximum(t00[0], t01[0]),
                         jnp.maximum(t10[0], t11[0]))                # (Mrows, Cin) bf16
    _write_padded(pad_ref, pooled.astype(jnp.float32), Wp, Mrows)
    _shifted_conv3x3(pad_ref, w_ref, h_ref, Wp, Mrows)
    _bn_partial_stats(h_ref, m_ref, s_ref, q_ref)


def _bnrelu_conv_kernel(Wp, Mrows,
                        h_in_ref, a_ref, b_ref, w_ref, m_ref,
                        h_ref, s_ref, q_ref, pad_ref):
    """BN1 (precomputed affine) + ReLU + conv2 + BN2 partial statistics."""
    hn = jnp.maximum(h_in_ref[0] * a_ref[0] + b_ref[0], 0.0) * m_ref[0]   # zero the pad cols
    _write_padded(pad_ref, hn, Wp, Mrows)
    _shifted_conv3x3(pad_ref, w_ref, h_ref, Wp, Mrows)
    _bn_partial_stats(h_ref, m_ref, s_ref, q_ref)


def _bnrelu_kernel(h_ref, a_ref, b_ref, y_ref):
    """Final BN2 + ReLU (needs global batch stats, hence its own pass)."""
    y_ref[0] = jnp.maximum(h_ref[0] * a_ref[0] + b_ref[0], 0.0)


# --------------------------------- wrapper -----------------------------------

def _bn_affine(s, q, gamma, beta, cnt):
    """Fold batch-norm into y = h * a + c (f32; single-pass var, fine at these counts)."""
    mean = jnp.sum(s, axis=0) / cnt                                   # (1, C)
    var = jnp.maximum(jnp.sum(q, axis=0) / cnt - mean * mean, 0.0)    # biased variance
    a = gamma[None, :] * lax.rsqrt(var + _EPS)
    c = beta[None, :] - mean * a
    return a[None].astype(jnp.float32), c[None].astype(jnp.float32)   # (1, 1, C)


def contracting_block(x_nchw, params):
    """Pallas implementation of ContractingBlock.forward. Input/output are NCHW."""
    w1, w2, g1, b1, g2, b2 = params
    N, Cin, H0, W0 = x_nchw.shape
    assert H0 % 2 == 0 and W0 % 2 == 0
    H, W = H0 // 2, W0 // 2
    Wp = W + 2
    Mrows = H * Wp
    Mscr = Mrows + 2 * (Wp + 1)          # padded flat buffer (+2 slack rows for the last taps)
    Cmid = w1.shape[-1]
    Cout = w2.shape[-1]
    cnt = float(N * H * W)

    # ---- layout glue (plain JAX, no compute): NCHW -> NHWC, pool taps in flat layout ----
    x = jnp.transpose(x_nchw, (0, 2, 3, 1)).astype(jnp.bfloat16)

    def tap(dy, dx):
        t = x[:, dy::2, dx::2, :]                             # (N, H, W, Cin)
        t = jnp.pad(t, ((0, 0), (0, 0), (0, 2), (0, 0)))      # append the 2 zero pad columns
        return t.reshape(N, Mrows, Cin)

    taps = [tap(dy, dx) for dy in (0, 1) for dx in (0, 1)]

    mask = (jnp.arange(Wp) < W).astype(jnp.float32)
    mask = jnp.tile(mask, H).reshape(1, Mrows, 1)             # valid-pixel mask in flat layout

    w1k = w1.reshape(9, Cin, Cmid).astype(jnp.bfloat16)
    w2k = w2.reshape(9, Cmid, Cout).astype(jnp.bfloat16)

    cparams = pltpu.CompilerParams(dimension_semantics=("parallel",),
                                   vmem_limit_bytes=_VMEM_LIMIT)

    def img_spec(m, c):
        return pl.BlockSpec((1, m, c), lambda n: (n, 0, 0))

    def const_spec(shape):
        nd = len(shape)
        return pl.BlockSpec(shape, lambda n: (0,) * nd)

    stat_spec_mid = pl.BlockSpec((1, 1, Cmid), lambda n: (n, 0, 0))
    stat_spec_out = pl.BlockSpec((1, 1, Cout), lambda n: (n, 0, 0))

    # ---- pass 1: fused maxpool + conv1 + BN1 partial stats ----
    h1, s1, q1 = pl.pallas_call(
        functools.partial(_pool_conv_kernel, Wp, Mrows),
        grid=(N,),
        in_specs=[img_spec(Mrows, Cin)] * 4 + [const_spec((9, Cin, Cmid)),
                                               const_spec((1, Mrows, 1))],
        out_specs=(img_spec(Mrows, Cmid), stat_spec_mid, stat_spec_mid),
        out_shape=(jax.ShapeDtypeStruct((N, Mrows, Cmid), jnp.float32),
                   jax.ShapeDtypeStruct((N, 1, Cmid), jnp.float32),
                   jax.ShapeDtypeStruct((N, 1, Cmid), jnp.float32)),
        scratch_shapes=[pltpu.VMEM((Mscr, Cin), jnp.float32)],
        compiler_params=cparams,
    )(*taps, w1k, mask)

    a1, c1 = _bn_affine(s1, q1, g1, b1, cnt)

    # ---- pass 2: BN1 + ReLU + conv2 + BN2 partial stats ----
    h2, s2, q2 = pl.pallas_call(
        functools.partial(_bnrelu_conv_kernel, Wp, Mrows),
        grid=(N,),
        in_specs=[img_spec(Mrows, Cmid), const_spec((1, 1, Cmid)), const_spec((1, 1, Cmid)),
                  const_spec((9, Cmid, Cout)), const_spec((1, Mrows, 1))],
        out_specs=(img_spec(Mrows, Cout), stat_spec_out, stat_spec_out),
        out_shape=(jax.ShapeDtypeStruct((N, Mrows, Cout), jnp.float32),
                   jax.ShapeDtypeStruct((N, 1, Cout), jnp.float32),
                   jax.ShapeDtypeStruct((N, 1, Cout), jnp.float32)),
        scratch_shapes=[pltpu.VMEM((Mscr, Cmid), jnp.float32)],
        compiler_params=cparams,
    )(h1, a1, c1, w2k, mask)

    a2, c2 = _bn_affine(s2, q2, g2, b2, cnt)

    # ---- pass 3: BN2 + ReLU ----
    y = pl.pallas_call(
        _bnrelu_kernel,
        grid=(N,),
        in_specs=[img_spec(Mrows, Cout), const_spec((1, 1, Cout)), const_spec((1, 1, Cout))],
        out_specs=img_spec(Mrows, Cout),
        out_shape=jax.ShapeDtypeStruct((N, Mrows, Cout), jnp.float32),
        compiler_params=cparams,
    )(h2, a2, c2)

    # flat layout -> NCHW (strip the 2 pad columns per row)
    y = y.reshape(N, H, Wp, Cout)[:, :, :W, :]
    return jnp.transpose(y, (0, 3, 1, 2))


# ------------------------------ params & reference ----------------------------

def init_params(key, cin, cout):
    """Deterministic synthetic params (PyTorch-default-ish shapes/init, HWIO weights)."""
    k1, k2 = jax.random.split(key)
    bound1 = 1.0 / (cin * 9) ** 0.5
    bound2 = 1.0 / (cout * 9) ** 0.5
    w1 = jax.random.uniform(k1, (3, 3, cin, cout), jnp.float32, -bound1, bound1)
    w2 = jax.random.uniform(k2, (3, 3, cout, cout), jnp.float32, -bound2, bound2)
    g1 = jnp.ones((cout,), jnp.float32)
    b1 = jnp.zeros((cout,), jnp.float32)
    g2 = jnp.ones((cout,), jnp.float32)
    b2 = jnp.zeros((cout,), jnp.float32)
    return w1, w2, g1, b1, g2, b2


def reference(x_nchw, params, matmul_dtype=jnp.float32):
    """Pure-JAX reference. matmul_dtype=bf16 matches the kernel's MXU numerics exactly."""
    w1, w2, g1, b1, g2, b2 = params
    x = jnp.transpose(x_nchw, (0, 2, 3, 1))
    x = lax.reduce_window(x, -jnp.inf, lax.max, (1, 2, 2, 1), (1, 2, 2, 1), 'VALID')

    def conv_bn_relu(h, w, g, b):
        h = lax.conv_general_dilated(
            h.astype(matmul_dtype), w.astype(matmul_dtype), (1, 1), [(1, 1), (1, 1)],
            dimension_numbers=('NHWC', 'HWIO', 'NHWC'),
            preferred_element_type=jnp.float32)
        mean = jnp.mean(h, axis=(0, 1, 2), keepdims=True)
        var = jnp.var(h, axis=(0, 1, 2), keepdims=True)
        h = (h - mean) * lax.rsqrt(var + _EPS) * g + b
        return jnp.maximum(h, 0.0)

    h = conv_bn_relu(x, w1, g1, b1)
    h = conv_bn_relu(h, w2, g2, b2)
    return jnp.transpose(h, (0, 3, 1, 2))


if __name__ == "__main__":
    key = jax.random.PRNGKey(0)
    kx, kp = jax.random.split(key)
    N, Cin, H0, W0, Cout = 2, 4, 16, 16, 8

    x = jax.random.normal(kx, (N, Cin, H0, W0), jnp.float32)
    params = init_params(kp, Cin, Cout)

    y = jax.block_until_ready(contracting_block(x, params))
    assert y.shape == (N, Cout, H0 // 2, W0 // 2), y.shape

    # bf16-matched reference (same MXU numerics) -> tight tolerance
    y_matched = reference(x, params, matmul_dtype=jnp.bfloat16)
    err_matched = float(jnp.max(jnp.abs(y - y_matched)))
    if not (err_matched < 3e-3):
        raise AssertionError(f"mismatch vs bf16-matched reference: {err_matched}")

    # full-f32 reference -> sanity check of the block semantics
    y_f32 = reference(x, params, matmul_dtype=jnp.float32)
    err_f32 = float(jnp.max(jnp.abs(y - y_f32)))
    if not (err_f32 < 1e-1):
        raise AssertionError(f"mismatch vs f32 reference: {err_f32}")

    print("KERNEL_OK")
</pallas_src>

<mosaic_0001>
module attributes {stable_mosaic.version = 11 : i64} {
  func.func @_pool_conv_kernel(%arg0: i32, %arg1: memref<1x80x4xbf16, #tpu.memory_space<vmem>>, %arg2: memref<1x80x4xbf16, #tpu.memory_space<vmem>>, %arg3: memref<1x80x4xbf16, #tpu.memory_space<vmem>>, %arg4: memref<1x80x4xbf16, #tpu.memory_space<vmem>>, %arg5: memref<9x4x8xbf16, #tpu.memory_space<vmem>>, %arg6: memref<1x80x1xf32, #tpu.memory_space<vmem>>, %arg7: memref<1x80x8xf32, #tpu.memory_space<vmem>>, %arg8: memref<1x1x8xf32, #tpu.memory_space<vmem>>, %arg9: memref<1x1x8xf32, #tpu.memory_space<vmem>>, %arg10: memref<102x4xf32, #tpu.memory_space<vmem>>) attributes {dimension_semantics = [#tpu.dimension_semantics<parallel>], iteration_bounds = array<i64: 2>, scalar_prefetch = 0 : i64, scratch_operands = 1 : i64, tpu.core_type = #tpu.core_type<tc>, window_params = [{transform_indices = @transform_0, window_bounds = array<i64: 1, 80, 4>}, {transform_indices = @transform_1, window_bounds = array<i64: 1, 80, 4>}, {transform_indices = @transform_2, window_bounds = array<i64: 1, 80, 4>}, {transform_indices = @transform_3, window_bounds = array<i64: 1, 80, 4>}, {pipeline_mode = #tpu.pipeline_mode<synchronous>, transform_indices = @transform_4, window_bounds = array<i64: 9, 4, 8>}, {pipeline_mode = #tpu.pipeline_mode<synchronous>, transform_indices = @transform_5, window_bounds = array<i64: 1, 80, 1>}, {transform_indices = @transform_6, window_bounds = array<i64: 1, 80, 8>}, {transform_indices = @transform_7, window_bounds = array<i64: 1, 1, 8>}, {transform_indices = @transform_8, window_bounds = array<i64: 1, 1, 8>}]} {
    %c0 = arith.constant 0 : index
    %c0_0 = arith.constant 0 : index
    %c0_1 = arith.constant 0 : index
    %0 = vector.load %arg1[%c0, %c0_0, %c0_1] : memref<1x80x4xbf16, #tpu.memory_space<vmem>>, vector<1x80x4xbf16>
    %1 = vector.shape_cast %0 : vector<1x80x4xbf16> to vector<80x4xbf16>
    %c0_2 = arith.constant 0 : index
    %c0_3 = arith.constant 0 : index
    %c0_4 = arith.constant 0 : index
    %2 = vector.load %arg2[%c0_2, %c0_3, %c0_4] : memref<1x80x4xbf16, #tpu.memory_space<vmem>>, vector<1x80x4xbf16>
    %3 = vector.shape_cast %2 : vector<1x80x4xbf16> to vector<80x4xbf16>
    %4 = arith.maximumf %1, %3 : vector<80x4xbf16>
    %c0_5 = arith.constant 0 : index
    %c0_6 = arith.constant 0 : index
    %c0_7 = arith.constant 0 : index
    %5 = vector.load %arg3[%c0_5, %c0_6, %c0_7] : memref<1x80x4xbf16, #tpu.memory_space<vmem>>, vector<1x80x4xbf16>
    %6 = vector.shape_cast %5 : vector<1x80x4xbf16> to vector<80x4xbf16>
    %c0_8 = arith.constant 0 : index
    %c0_9 = arith.constant 0 : index
    %c0_10 = arith.constant 0 : index
    %7 = vector.load %arg4[%c0_8, %c0_9, %c0_10] : memref<1x80x4xbf16, #tpu.memory_space<vmem>>, vector<1x80x4xbf16>
    %8 = vector.shape_cast %7 : vector<1x80x4xbf16> to vector<80x4xbf16>
    %9 = arith.maximumf %6, %8 : vector<80x4xbf16>
    %10 = arith.maximumf %4, %9 : vector<80x4xbf16>
    %11 = arith.extf %10 : vector<80x4xbf16> to vector<80x4xf32>
    %cst = arith.constant 0.000000e+00 : f32
    %12 = vector.broadcast %cst : f32 to vector<11x4xf32>
    %c0_11 = arith.constant 0 : index
    %c0_12 = arith.constant 0 : index
    %13 = vector.load %arg10[%c0_11, %c0_12] : memref<102x4xf32, #tpu.memory_space<vmem>>, vector<11x4xf32>
    tpu.vector_store %arg10[%c0_11, %c0_12], %12 {strides = array<i32>} : memref<102x4xf32, #tpu.memory_space<vmem>>, vector<11x4xf32>,
    %c91 = arith.constant 91 : index
    %c0_13 = arith.constant 0 : index
    %14 = vector.load %arg10[%c91, %c0_13] : memref<102x4xf32, #tpu.memory_space<vmem>>, vector<11x4xf32>
    tpu.vector_store %arg10[%c91, %c0_13], %12 {strides = array<i32>} : memref<102x4xf32, #tpu.memory_space<vmem>>, vector<11x4xf32>,
    %c11 = arith.constant 11 : index
    %c0_14 = arith.constant 0 : index
    %15 = vector.load %arg10[%c11, %c0_14] : memref<102x4xf32, #tpu.memory_space<vmem>>, vector<80x4xf32>
    tpu.vector_store %arg10[%c11, %c0_14], %11 {strides = array<i32>} : memref<102x4xf32, #tpu.memory_space<vmem>>, vector<80x4xf32>,
    %c0_15 = arith.constant 0 : index
    %c0_16 = arith.constant 0 : index
    %16 = vector.load %arg10[%c0_15, %c0_16] : memref<102x4xf32, #tpu.memory_space<vmem>>, vector<80x4xf32>
    %17 = arith.truncf %16 : vector<80x4xf32> to vector<80x4xbf16>
    %c0_17 = arith.constant 0 : index
    %c0_18 = arith.constant 0 : index
    %c0_19 = arith.constant 0 : index
    %18 = vector.load %arg5[%c0_17, %c0_18, %c0_19] : memref<9x4x8xbf16, #tpu.memory_space<vmem>>, vector<1x4x8xbf16>
    %19 = vector.shape_cast %18 : vector<1x4x8xbf16> to vector<4x8xbf16>
    %cst_20 = arith.constant dense<0.000000e+00> : vector<80x8xf32>
    %20 = tpu.matmul %17, %19, %cst_20 {dimension_numbers = #tpu.dot_dimension_numbers<[1], [0], [0], [1], [0, 0, 1, 1], [], []>} : vector<80x4xbf16>, vector<4x8xbf16>, vector<80x8xf32> -> vector<80x8xf32>
    %c0_21 = arith.constant 0 : index
    %c0_22 = arith.constant 0 : index
    %c0_23 = arith.constant 0 : index
    %21 = vector.load %arg7[%c0_21, %c0_22, %c0_23] : memref<1x80x8xf32, #tpu.memory_space<vmem>>, vector<1x80x8xf32>
    %22 = vector.shape_cast %21 : vector<1x80x8xf32> to vector<80x8xf32>
    %23 = vector.shape_cast %20 : vector<80x8xf32> to vector<1x80x8xf32>
    tpu.vector_store %arg7[%c0_21, %c0_22, %c0_23], %23 {strides = array<i32>} : memref<1x80x8xf32, #tpu.memory_space<vmem>>, vector<1x80x8xf32>,
    %c1 = arith.constant 1 : index
    %c0_24 = arith.constant 0 : index
    %24 = vector.load %arg10[%c1, %c0_24] : memref<102x4xf32, #tpu.memory_space<vmem>>, vector<80x4xf32>
    %25 = arith.truncf %24 : vector<80x4xf32> to vector<80x4xbf16>
    %c1_25 = arith.constant 1 : index
    %c0_26 = arith.constant 0 : index
    %c0_27 = arith.constant 0 : index
    %26 = vector.load %arg5[%c1_25, %c0_26, %c0_27] : memref<9x4x8xbf16, #tpu.memory_space<vmem>>, vector<1x4x8xbf16>
    %27 = vector.shape_cast %26 : vector<1x4x8xbf16> to vector<4x8xbf16>
    %cst_28 = arith.constant dense<0.000000e+00> : vector<80x8xf32>
    %28 = tpu.matmul %25, %27, %cst_28 {dimension_numbers = #tpu.dot_dimension_numbers<[1], [0], [0], [1], [0, 0, 1, 1], [], []>} : vector<80x4xbf16>, vector<4x8xbf16>, vector<80x8xf32> -> vector<80x8xf32>
    %c0_29 = arith.constant 0 : index
    %c0_30 = arith.constant 0 : index
    %c0_31 = arith.constant 0 : index
    %29 = vector.load %arg7[%c0_29, %c0_30, %c0_31] : memref<1x80x8xf32, #tpu.memory_space<vmem>>, vector<1x80x8xf32>
    %30 = vector.shape_cast %29 : vector<1x80x8xf32> to vector<80x8xf32>
    %31 = arith.addf %30, %28 : vector<80x8xf32>
    %c0_32 = arith.constant 0 : index
    %c0_33 = arith.constant 0 : index
    %c0_34 = arith.constant 0 : index
    %32 = vector.load %arg7[%c0_32, %c0_33, %c0_34] : memref<1x80x8xf32, #tpu.memory_space<vmem>>, vector<1x80x8xf32>
    %33 = vector.shape_cast %32 : vector<1x80x8xf32> to vector<80x8xf32>
    %34 = vector.shape_cast %31 : vector<80x8xf32> to vector<1x80x8xf32>
    tpu.vector_store %arg7[%c0_32, %c0_33, %c0_34], %34 {strides = array<i32>} : memref<1x80x8xf32, #tpu.memory_space<vmem>>, vector<1x80x8xf32>,
    %c2 = arith.constant 2 : index
    %c0_35 = arith.constant 0 : index
    %35 = vector.load %arg10[%c2, %c0_35] : memref<102x4xf32, #tpu.memory_space<vmem>>, vector<80x4xf32>
    %36 = arith.truncf %35 : vector<80x4xf32> to vector<80x4xbf16>
    %c2_36 = arith.constant 2 : index
    %c0_37 = arith.constant 0 : index
    %c0_38 = arith.constant 0 : index
    %37 = vector.load %arg5[%c2_36, %c0_37, %c0_38] : memref<9x4x8xbf16, #tpu.memory_space<vmem>>, vector<1x4x8xbf16>
    %38 = vector.shape_cast %37 : vector<1x4x8xbf16> to vector<4x8xbf16>
    %cst_39 = arith.constant dense<0.000000e+00> : vector<80x8xf32>
    %39 = tpu.matmul %36, %38, %cst_39 {dimension_numbers = #tpu.dot_dimension_numbers<[1], [0], [0], [1], [0, 0, 1, 1], [], []>} : vector<80x4xbf16>, vector<4x8xbf16>, vector<80x8xf32> -> vector<80x8xf32>
    %c0_40 = arith.constant 0 : index
    %c0_41 = arith.constant 0 : index
    %c0_42 = arith.constant 0 : index
    %40 = vector.load %arg7[%c0_40, %c0_41, %c0_42] : memref<1x80x8xf32, #tpu.memory_space<vmem>>, vector<1x80x8xf32>
    %41 = vector.shape_cast %40 : vector<1x80x8xf32> to vector<80x8xf32>
    %42 = arith.addf %41, %39 : vector<80x8xf32>
    %c0_43 = arith.constant 0 : index
    %c0_44 = arith.constant 0 : index
    %c0_45 = arith.constant 0 : index
    %43 = vector.load %arg7[%c0_43, %c0_44, %c0_45] : memref<1x80x8xf32, #tpu.memory_space<vmem>>, vector<1x80x8xf32>
    %44 = vector.shape_cast %43 : vector<1x80x8xf32> to vector<80x8xf32>
    %45 = vector.shape_cast %42 : vector<80x8xf32> to vector<1x80x8xf32>
    tpu.vector_store %arg7[%c0_43, %c0_44, %c0_45], %45 {strides = array<i32>} : memref<1x80x8xf32, #tpu.memory_space<vmem>>, vector<1x80x8xf32>,
    %c10 = arith.constant 10 : index
    %c0_46 = arith.constant 0 : index
    %46 = vector.load %arg10[%c10, %c0_46] : memref<102x4xf32, #tpu.memory_space<vmem>>, vector<80x4xf32>
    %47 = arith.truncf %46 : vector<80x4xf32> to vector<80x4xbf16>
    %c3 = arith.constant 3 : index
    %c0_47 = arith.constant 0 : index
    %c0_48 = arith.constant 0 : index
    %48 = vector.load %arg5[%c3, %c0_47, %c0_48] : memref<9x4x8xbf16, #tpu.memory_space<vmem>>, vector<1x4x8xbf16>
    %49 = vector.shape_cast %48 : vector<1x4x8xbf16> to vector<4x8xbf16>
    %cst_49 = arith.constant dense<0.000000e+00> : vector<80x8xf32>
    %50 = tpu.matmul %47, %49, %cst_49 {dimension_numbers = #tpu.dot_dimension_numbers<[1], [0], [0], [1], [0, 0, 1, 1], [], []>} : vector<80x4xbf16>, vector<4x8xbf16>, vector<80x8xf32> -> vector<80x8xf32>
    %c0_50 = arith.constant 0 : index
    %c0_51 = arith.constant 0 : index
    %c0_52 = arith.constant 0 : index
    %51 = vector.load %arg7[%c0_50, %c0_51, %c0_52] : memref<1x80x8xf32, #tpu.memory_space<vmem>>, vector<1x80x8xf32>
    %52 = vector.shape_cast %51 : vector<1x80x8xf32> to vector<80x8xf32>
    %53 = arith.addf %52, %50 : vector<80x8xf32>
    %c0_53 = arith.constant 0 : index
    %c0_54 = arith.constant 0 : index
    %c0_55 = arith.constant 0 : index
    %54 = vector.load %arg7[%c0_53, %c0_54, %c0_55] : memref<1x80x8xf32, #tpu.memory_space<vmem>>, vector<1x80x8xf32>
    %55 = vector.shape_cast %54 : vector<1x80x8xf32> to vector<80x8xf32>
    %56 = vector.shape_cast %53 : vector<80x8xf32> to vector<1x80x8xf32>
    tpu.vector_store %arg7[%c0_53, %c0_54, %c0_55], %56 {strides = array<i32>} : memref<1x80x8xf32, #tpu.memory_space<vmem>>, vector<1x80x8xf32>,
    %c11_56 = arith.constant 11 : index
    %c0_57 = arith.constant 0 : index
    %57 = vector.load %arg10[%c11_56, %c0_57] : memref<102x4xf32, #tpu.memory_space<vmem>>, vector<80x4xf32>
    %58 = arith.truncf %57 : vector<80x4xf32> to vector<80x4xbf16>
    %c4 = arith.constant 4 : index
    %c0_58 = arith.constant 0 : index
    %c0_59 = arith.constant 0 : index
    %59 = vector.load %arg5[%c4, %c0_58, %c0_59] : memref<9x4x8xbf16, #tpu.memory_space<vmem>>, vector<1x4x8xbf16>
    %60 = vector.shape_cast %59 : vector<1x4x8xbf16> to vector<4x8xbf16>
    %cst_60 = arith.constant dense<0.000000e+00> : vector<80x8xf32>
    %61 = tpu.matmul %58, %60, %cst_60 {dimension_numbers = #tpu.dot_dimension_numbers<[1], [0], [0], [1], [0, 0, 1, 1], [], []>} : vector<80x4xbf16>, vector<4x8xbf16>, vector<80x8xf32> -> vector<80x8xf32>
    %c0_61 = arith.constant 0 : index
    %c0_62 = arith.constant 0 : index
    %c0_63 = arith.constant 0 : index
    %62 = vector.load %arg7[%c0_61, %c0_62, %c0_63] : memref<1x80x8xf32, #tpu.memory_space<vmem>>, vector<1x80x8xf32>
    %63 = vector.shape_cast %62 : vector<1x80x8xf32> to vector<80x8xf32>
    %64 = arith.addf %63, %61 : vector<80x8xf32>
    %c0_64 = arith.constant 0 : index
    %c0_65 = arith.constant 0 : index
    %c0_66 = arith.constant 0 : index
    %65 = vector.load %arg7[%c0_64, %c0_65, %c0_66] : memref<1x80x8xf32, #tpu.memory_space<vmem>>, vector<1x80x8xf32>
    %66 = vector.shape_cast %65 : vector<1x80x8xf32> to vector<80x8xf32>
    %67 = vector.shape_cast %64 : vector<80x8xf32> to vector<1x80x8xf32>
    tpu.vector_store %arg7[%c0_64, %c0_65, %c0_66], %67 {strides = array<i32>} : memref<1x80x8xf32, #tpu.memory_space<vmem>>, vector<1x80x8xf32>,
    %c12 = arith.constant 12 : index
    %c0_67 = arith.constant 0 : index
    %68 = vector.load %arg10[%c12, %c0_67] : memref<102x4xf32, #tpu.memory_space<vmem>>, vector<80x4xf32>
    %69 = arith.truncf %68 : vector<80x4xf32> to vector<80x4xbf16>
    %c5 = arith.constant 5 : index
    %c0_68 = arith.constant 0 : index
    %c0_69 = arith.constant 0 : index
    %70 = vector.load %arg5[%c5, %c0_68, %c0_69] : memref<9x4x8xbf16, #tpu.memory_space<vmem>>, vector<1x4x8xbf16>
    %71 = vector.shape_cast %70 : vector<1x4x8xbf16> to vector<4x8xbf16>
    %cst_70 = arith.constant dense<0.000000e+00> : vector<80x8xf32>
    %72 = tpu.matmul %69, %71, %cst_70 {dimension_numbers = #tpu.dot_dimension_numbers<[1], [0], [0], [1], [0, 0, 1, 1], [], []>} : vector<80x4xbf16>, vector<4x8xbf16>, vector<80x8xf32> -> vector<80x8xf32>
    %c0_71 = arith.constant 0 : index
    %c0_72 = arith.constant 0 : index
    %c0_73 = arith.constant 0 : index
    %73 = vector.load %arg7[%c0_71, %c0_72, %c0_73] : memref<1x80x8xf32, #tpu.memory_space<vmem>>, vector<1x80x8xf32>
    %74 = vector.shape_cast %73 : vector<1x80x8xf32> to vector<80x8xf32>
    %75 = arith.addf %74, %72 : vector<80x8xf32>
    %c0_74 = arith.constant 0 : index
    %c0_75 = arith.constant 0 : index
    %c0_76 = arith.constant 0 : index
    %76 = vector.load %arg7[%c0_74, %c0_75, %c0_76] : memref<1x80x8xf32, #tpu.memory_space<vmem>>, vector<1x80x8xf32>
    %77 = vector.shape_cast %76 : vector<1x80x8xf32> to vector<80x8xf32>
    %78 = vector.shape_cast %75 : vector<80x8xf32> to vector<1x80x8xf32>
    tpu.vector_store %arg7[%c0_74, %c0_75, %c0_76], %78 {strides = array<i32>} : memref<1x80x8xf32, #tpu.memory_space<vmem>>, vector<1x80x8xf32>,
    %c20 = arith.constant 20 : index
    %c0_77 = arith.constant 0 : index
    %79 = vector.load %arg10[%c20, %c0_77] : memref<102x4xf32, #tpu.memory_space<vmem>>, vector<80x4xf32>
    %80 = arith.truncf %79 : vector<80x4xf32> to vector<80x4xbf16>
    %c6 = arith.constant 6 : index
    %c0_78 = arith.constant 0 : index
    %c0_79 = arith.constant 0 : index
    %81 = vector.load %arg5[%c6, %c0_78, %c0_79] : memref<9x4x8xbf16, #tpu.memory_space<vmem>>, vector<1x4x8xbf16>
    %82 = vector.shape_cast %81 : vector<1x4x8xbf16> to vector<4x8xbf16>
    %cst_80 = arith.constant dense<0.000000e+00> : vector<80x8xf32>
    %83 = tpu.matmul %80, %82, %cst_80 {dimension_numbers = #tpu.dot_dimension_numbers<[1], [0], [0], [1], [0, 0, 1, 1], [], []>} : vector<80x4xbf16>, vector<4x8xbf16>, vector<80x8xf32> -> vector<80x8xf32>
    %c0_81 = arith.constant 0 : index
    %c0_82 = arith.constant 0 : index
    %c0_83 = arith.constant 0 : index
    %84 = vector.load %arg7[%c0_81, %c0_82, %c0_83] : memref<1x80x8xf32, #tpu.memory_space<vmem>>, vector<1x80x8xf32>
    %85 = vector.shape_cast %84 : vector<1x80x8xf32> to vector<80x8xf32>
    %86 = arith.addf %85, %83 : vector<80x8xf32>
    %c0_84 = arith.constant 0 : index
    %c0_85 = arith.constant 0 : index
    %c0_86 = arith.constant 0 : index
    %87 = vector.load %arg7[%c0_84, %c0_85, %c0_86] : memref<1x80x8xf32, #tpu.memory_space<vmem>>, vector<1x80x8xf32>
    %88 = vector.shape_cast %87 : vector<1x80x8xf32> to vector<80x8xf32>
    %89 = vector.shape_cast %86 : vector<80x8xf32> to vector<1x80x8xf32>
    tpu.vector_store %arg7[%c0_84, %c0_85, %c0_86], %89 {strides = array<i32>} : memref<1x80x8xf32, #tpu.memory_space<vmem>>, vector<1x80x8xf32>,
    %c21 = arith.constant 21 : index
    %c0_87 = arith.constant 0 : index
    %90 = vector.load %arg10[%c21, %c0_87] : memref<102x4xf32, #tpu.memory_space<vmem>>, vector<80x4xf32>
    %91 = arith.truncf %90 : vector<80x4xf32> to vector<80x4xbf16>
    %c7 = arith.constant 7 : index
    %c0_88 = arith.constant 0 : index
    %c0_89 = arith.constant 0 : index
    %92 = vector.load %arg5[%c7, %c0_88, %c0_89] : memref<9x4x8xbf16, #tpu.memory_space<vmem>>, vector<1x4x8xbf16>
    %93 = vector.shape_cast %92 : vector<1x4x8xbf16> to vector<4x8xbf16>
    %cst_90 = arith.constant dense<0.000000e+00> : vector<80x8xf32>
    %94 = tpu.matmul %91, %93, %cst_90 {dimension_numbers = #tpu.dot_dimension_numbers<[1], [0], [0], [1], [0, 0, 1, 1], [], []>} : vector<80x4xbf16>, vector<4x8xbf16>, vector<80x8xf32> -> vector<80x8xf32>
    %c0_91 = arith.constant 0 : index
    %c0_92 = arith.constant 0 : index
    %c0_93 = arith.constant 0 : index
    %95 = vector.load %arg7[%c0_91, %c0_92, %c0_93] : memref<1x80x8xf32, #tpu.memory_space<vmem>>, vector<1x80x8xf32>
    %96 = vector.shape_cast %95 : vector<1x80x8xf32> to vector<80x8xf32>
    %97 = arith.addf %96, %94 : vector<80x8xf32>
    %c0_94 = arith.constant 0 : index
    %c0_95 = arith.constant 0 : index
    %c0_96 = arith.constant 0 : index
    %98 = vector.load %arg7[%c0_94, %c0_95, %c0_96] : memref<1x80x8xf32, #tpu.memory_space<vmem>>, vector<1x80x8xf32>
    %99 = vector.shape_cast %98 : vector<1x80x8xf32> to vector<80x8xf32>
    %100 = vector.shape_cast %97 : vector<80x8xf32> to vector<1x80x8xf32>
    tpu.vector_store %arg7[%c0_94, %c0_95, %c0_96], %100 {strides = array<i32>} : memref<1x80x8xf32, #tpu.memory_space<vmem>>, vector<1x80x8xf32>,
    %c22 = arith.constant 22 : index
    %c0_97 = arith.constant 0 : index
    %101 = vector.load %arg10[%c22, %c0_97] : memref<102x4xf32, #tpu.memory_space<vmem>>, vector<80x4xf32>
    %102 = arith.truncf %101 : vector<80x4xf32> to vector<80x4xbf16>
    %c8 = arith.constant 8 : index
    %c0_98 = arith.constant 0 : index
    %c0_99 = arith.constant 0 : index
    %103 = vector.load %arg5[%c8, %c0_98, %c0_99] : memref<9x4x8xbf16, #tpu.memory_space<vmem>>, vector<1x4x8xbf16>
    %104 = vector.shape_cast %103 : vector<1x4x8xbf16> to vector<4x8xbf16>
    %cst_100 = arith.constant dense<0.000000e+00> : vector<80x8xf32>
    %105 = tpu.matmul %102, %104, %cst_100 {dimension_numbers = #tpu.dot_dimension_numbers<[1], [0], [0], [1], [0, 0, 1, 1], [], []>} : vector<80x4xbf16>, vector<4x8xbf16>, vector<80x8xf32> -> vector<80x8xf32>
    %c0_101 = arith.constant 0 : index
    %c0_102 = arith.constant 0 : index
    %c0_103 = arith.constant 0 : index
    %106 = vector.load %arg7[%c0_101, %c0_102, %c0_103] : memref<1x80x8xf32, #tpu.memory_space<vmem>>, vector<1x80x8xf32>
    %107 = vector.shape_cast %106 : vector<1x80x8xf32> to vector<80x8xf32>
    %108 = arith.addf %107, %105 : vector<80x8xf32>
    %c0_104 = arith.constant 0 : index
    %c0_105 = arith.constant 0 : index
    %c0_106 = arith.constant 0 : index
    %109 = vector.load %arg7[%c0_104, %c0_105, %c0_106] : memref<1x80x8xf32, #tpu.memory_space<vmem>>, vector<1x80x8xf32>
    %110 = vector.shape_cast %109 : vector<1x80x8xf32> to vector<80x8xf32>
    %111 = vector.shape_cast %108 : vector<80x8xf32> to vector<1x80x8xf32>
    tpu.vector_store %arg7[%c0_104, %c0_105, %c0_106], %111 {strides = array<i32>} : memref<1x80x8xf32, #tpu.memory_space<vmem>>, vector<1x80x8xf32>,
    %c0_107 = arith.constant 0 : index
    %c0_108 = arith.constant 0 : index
    %c0_109 = arith.constant 0 : index
    %112 = vector.load %arg7[%c0_107, %c0_108, %c0_109] : memref<1x80x8xf32, #tpu.memory_space<vmem>>, vector<1x80x8xf32>
    %113 = vector.shape_cast %112 : vector<1x80x8xf32> to vector<80x8xf32>
    %c0_110 = arith.constant 0 : index
    %c0_111 = arith.constant 0 : index
    %c0_112 = arith.constant 0 : index
    %114 = vector.load %arg6[%c0_110, %c0_111, %c0_112] : memref<1x80x1xf32, #tpu.memory_space<vmem>>, vector<1x80x1xf32>
    %115 = vector.shape_cast %114 : vector<1x80x1xf32> to vector<80x1xf32>
    %116 = vector.broadcast %115 : vector<80x1xf32> to vector<80x8xf32>
    %117 = arith.mulf %113, %116 : vector<80x8xf32>
    %cst_113 = arith.constant dense<0.000000e+00> : vector<8xf32>
    %118 = vector.multi_reduction <add>, %117, %cst_113 [0] : vector<80x8xf32> to vector<8xf32>
    %119 = vector.shape_cast %118 : vector<8xf32> to vector<1x8xf32>
    %c0_114 = arith.constant 0 : index
    %c0_115 = arith.constant 0 : index
    %c0_116 = arith.constant 0 : index
    %120 = vector.load %arg8[%c0_114, %c0_115, %c0_116] : memref<1x1x8xf32, #tpu.memory_space<vmem>>, vector<1x1x8xf32>
    %121 = vector.shape_cast %120 : vector<1x1x8xf32> to vector<1x8xf32>
    %122 = vector.shape_cast %119 : vector<1x8xf32> to vector<1x1x8xf32>
    tpu.vector_store %arg8[%c0_114, %c0_115, %c0_116], %122 {strides = array<i32>} : memref<1x1x8xf32, #tpu.memory_space<vmem>>, vector<1x1x8xf32>,
    %123 = arith.mulf %117, %117 : vector<80x8xf32>
    %cst_117 = arith.constant dense<0.000000e+00> : vector<8xf32>
    %124 = vector.multi_reduction <add>, %123, %cst_117 [0] : vector<80x8xf32> to vector<8xf32>
    %125 = vector.shape_cast %124 : vector<8xf32> to vector<1x8xf32>
    %c0_118 = arith.constant 0 : index
    %c0_119 = arith.constant 0 : index
    %c0_120 = arith.constant 0 : index
    %126 = vector.load %arg9[%c0_118, %c0_119, %c0_120] : memref<1x1x8xf32, #tpu.memory_space<vmem>>, vector<1x1x8xf32>
    %127 = vector.shape_cast %126 : vector<1x1x8xf32> to vector<1x8xf32>
    %128 = vector.shape_cast %125 : vector<1x8xf32> to vector<1x1x8xf32>
    tpu.vector_store %arg9[%c0_118, %c0_119, %c0_120], %128 {strides = array<i32>} : memref<1x1x8xf32, #tpu.memory_space<vmem>>, vector<1x1x8xf32>,
    return
  }
  func.func @transform_0(%arg0: i32) -> (i32, i32, i32) {
    %c0_i32 = arith.constant 0 : i32
    %c0_i32_0 = arith.constant 0 : i32
    %c0_i32_1 = arith.constant 0 : i32
    return %arg0, %c0_i32, %c0_i32_0 : i32, i32, i32
  }
  func.func @transform_1(%arg0: i32) -> (i32, i32, i32) {
    %c0_i32 = arith.constant 0 : i32
    %c0_i32_0 = arith.constant 0 : i32
    %c0_i32_1 = arith.constant 0 : i32
    return %arg0, %c0_i32, %c0_i32_0 : i32, i32, i32
  }
  func.func @transform_2(%arg0: i32) -> (i32, i32, i32) {
    %c0_i32 = arith.constant 0 : i32
    %c0_i32_0 = arith.constant 0 : i32
    %c0_i32_1 = arith.constant 0 : i32
    return %arg0, %c0_i32, %c0_i32_0 : i32, i32, i32
  }
  func.func @transform_3(%arg0: i32) -> (i32, i32, i32) {
    %c0_i32 = arith.constant 0 : i32
    %c0_i32_0 = arith.constant 0 : i32
    %c0_i32_1 = arith.constant 0 : i32
    return %arg0, %c0_i32, %c0_i32_0 : i32, i32, i32
  }
  func.func @transform_4(%arg0: i32) -> (i32, i32, i32) {
    %c0_i32 = arith.constant 0 : i32
    %c0_i32_0 = arith.constant 0 : i32
    %c0_i32_1 = arith.constant 0 : i32
    %c0_i32_2 = arith.constant 0 : i32
    return %c0_i32, %c0_i32_0, %c0_i32_1 : i32, i32, i32
  }
  func.func @transform_5(%arg0: i32) -> (i32, i32, i32) {
    %c0_i32 = arith.constant 0 : i32
    %c0_i32_0 = arith.constant 0 : i32
    %c0_i32_1 = arith.constant 0 : i32
    %c0_i32_2 = arith.constant 0 : i32
    return %c0_i32, %c0_i32_0, %c0_i32_1 : i32, i32, i32
  }
  func.func @transform_6(%arg0: i32) -> (i32, i32, i32) {
    %c0_i32 = arith.constant 0 : i32
    %c0_i32_0 = arith.constant 0 : i32
    %c0_i32_1 = arith.constant 0 : i32
    return %arg0, %c0_i32, %c0_i32_0 : i32, i32, i32
  }
  func.func @transform_7(%arg0: i32) -> (i32, i32, i32) {
    %c0_i32 = arith.constant 0 : i32
    %c0_i32_0 = arith.constant 0 : i32
    %c0_i32_1 = arith.constant 0 : i32
    return %arg0, %c0_i32, %c0_i32_0 : i32, i32, i32
  }
  func.func @transform_8(%arg0: i32) -> (i32, i32, i32) {
    %c0_i32 = arith.constant 0 : i32
    %c0_i32_0 = arith.constant 0 : i32
    %c0_i32_1 = arith.constant 0 : i32
    return %arg0, %c0_i32, %c0_i32_0 : i32, i32, i32
  }
}

</mosaic_0001>

<llo_original>
// kernel: tpu_custom_call.1
$region0: #{tpu_custom_call.1}
  #allocation0 [shape = 'u32[]', space=smem, size = 0x4, offset = 0x4, fixed_abs, tag = 'smem constant byte address 0x4 - core index']
  #allocation1 [shape = 'u32[144,128]{1,0:T(1,128)}', space=vmem, size = 0x12000, scoped, tag = 'internal scratch']
  #allocation2 [shape = 'f32[102,4]{1,0:T(8,128)}', space=vmem, size = 0xd000, scoped, tag = 'scratch operand']
  %s0 = inlined_call_operand.vmem [shape: bf16[2,80,4], index: 0, kind: input, shape index: {}]
  %s1 = inlined_call_operand.vmem [shape: bf16[2,80,4], index: 1, kind: input, shape index: {}]
  %s2 = inlined_call_operand.vmem [shape: bf16[2,80,4], index: 2, kind: input, shape index: {}]
  %s3 = inlined_call_operand.vmem [shape: bf16[2,80,4], index: 3, kind: input, shape index: {}]
  %s4 = inlined_call_operand.vmem [shape: bf16[9,4,8], index: 4, kind: input, shape index: {}]
  %s5 = inlined_call_operand.vmem [shape: f32[1,80,1], index: 5, kind: input, shape index: {}]
  %s6 = inlined_call_operand.vmem [shape: f32[2,80,8], index: 6, kind: output, shape index: {0}]
  %s7 = inlined_call_operand.hbm [shape: f32[2,1,8], index: 7, kind: output, shape index: {1}]
  %s8 = inlined_call_operand.hbm [shape: f32[2,1,8], index: 8, kind: output, shape index: {2}]
  %9 = xla_tuple %s6, %s7, %s8
  %s10 = sld [smem:[#allocation0]]
  $region73: #{tpu_custom_call.1} parent=0
    _
  %s12 = ssub.s32 1, %s10
  %s13 = scalar_select 0, %s12, %s10
  $region1: #{tpu_custom_call.1} parent=0
    #allocation3 [shape = 'u8[1024]{0}', space=vmem, size = 0x400, scoped, tag = 'output window, operand 1']
    #allocation4 [shape = 's32[2]{0}', space=sflag, size = 0x8, scoped, tag = 'scoped memory for tpu_custom_call.1']
    #allocation5 [shape = 'u8[1024]{0}', space=vmem, size = 0x400, scoped, tag = 'output window, operand 2']
    #allocation6 [shape = 's32[2]{0}', space=sflag, size = 0x8, scoped, tag = 'scoped memory for tpu_custom_call.1']
    %14 = vsyncpa [#allocation4], 0
    %s15 = scalar_lea.sflag [#allocation4], 1
    %16 = vsyncpa %s15, 0
    %17 = vsyncpa [#allocation6], 0
    %s18 = scalar_lea.sflag [#allocation6], 1
    %19 = vsyncpa %s18, 0
    loop: start=0, step=1, limit=4
    $region2: #{tpu_custom_call.1} parent=1 // loop_pre_header
      _
    $region3: #{tpu_custom_call.1} parent=1 // loop_header
      %s21 = sphi 0, %s25
      %p22 = scmp.ge.s32.totalorder %s21, 4
      %s31 = sphi 0, %s33
      %s34 = sphi 0, %s31
      %s35 = sphi 0, %s34
      %s51 = sphi 0, %s35
      %s57 = sphi 0, %s59
      %s60 = sphi 0, %s57
      %s61 = sphi 0, %s60
      %s77 = sphi 0, %s61
      %s83 = sphi 0, %s85
      %s86 = sphi 0, %s83
      %s87 = sphi 0, %s86
      %s103 = sphi 0, %s87
      %s109 = sphi 0, %s111
      %s112 = sphi 0, %s109
      %s113 = sphi 0, %s112
      %s129 = sphi 0, %s113
      %s133 = sphi 0, %s133
      %s135 = sphi 0, %s133
      %s136 = sphi 0, %s135
      %s150 = sphi 0, %s136
      %s154 = sphi 0, %s154
      %s156 = sphi 0, %s154
      %s157 = sphi 0, %s156
      %s171 = sphi 0, %s157
      %s177 = sphi 0, %s179
      %s180 = sphi 0, %s177
      %s181 = sphi 0, %s180
      %s197 = sphi 0, %s181
      %s203 = sphi 0, %s205
      %s206 = sphi 0, %s203
      %s207 = sphi 0, %s206
      %s223 = sphi 0, %s207
      %s229 = sphi 0, %s231
      %s232 = sphi 0, %s229
      %s233 = sphi 0, %s232
      %s249 = sphi 0, %s233
    $region4: #{tpu_custom_call.1} parent=1 // loop_header_branch
      %24 = sbr.rel (%p22) target = $region8
    $region5: #{tpu_custom_call.1} parent=1 // loop_body
      %s26 = ssub.s32 %s21, 1
      %s27 = ssub.s32 %s21, 2
      %s28 = sadd.s32 %s21, 1
      %s29 = ssub.s32 %s21, %s28
      %p30 = scmp.eq.s32.totalorder %s29, 0
      %s32 = sadd.s32 %s31, 1
      %s33 = scalar_select %p30, %s31, %s32
      %p36 = pneg %p30
      %p37 = scmp.eq.s32.totalorder %s21, 1
      %p38 = por %p36, %p37
      %p39 = scmp.ne.s32.totalorder %s31, %s34
      %p40 = scmp.eq.s32.totalorder %s21, 0
      %p41 = por %p39, %p40
      %p42 = scmp.ne.s32.totalorder %s31, %s34
      %p43 = scmp.eq.s32.totalorder %s26, 1
      %p44 = por %p42, %p43
      %p45 = scmp.ne.s32.totalorder %s34, %s35
      %p46 = scmp.eq.s32.totalorder %s26, 0
      %p47 = por %p45, %p46
      %p48 = scmp.ne.s32.totalorder %s34, %s35
      %p49 = scmp.eq.s32.totalorder %s27, 1
      %p50 = por %p48, %p49
      %p52 = scmp.ne.s32.totalorder %s35, %s51
      %p53 = scmp.eq.s32.totalorder %s27, 0
      %p54 = por %p52, %p53
      %s55 = ssub.s32 %s21, %s28
      %p56 = scmp.eq.s32.totalorder %s55, 0
      %s58 = sadd.s32 %s57, 1
      %s59 = scalar_select %p56, %s57, %s58
      %p62 = pneg %p56
      %p63 = scmp.eq.s32.totalorder %s21, 1
      %p64 = por %p62, %p63
      %p65 = scmp.ne.s32.totalorder %s57, %s60
      %p66 = scmp.eq.s32.totalorder %s21, 0
      %p67 = por %p65, %p66
      %p68 = scmp.ne.s32.totalorder %s57, %s60
      %p69 = scmp.eq.s32.totalorder %s26, 1
      %p70 = por %p68, %p69
      %p71 = scmp.ne.s32.totalorder %s60, %s61
      %p72 = scmp.eq.s32.totalorder %s26, 0
      %p73 = por %p71, %p72
      %p74 = scmp.ne.s32.totalorder %s60, %s61
      %p75 = scmp.eq.s32.totalorder %s27, 1
      %p76 = por %p74, %p75
      %p78 = scmp.ne.s32.totalorder %s61, %s77
      %p79 = scmp.eq.s32.totalorder %s27, 0
      %p80 = por %p78, %p79
      %s81 = ssub.s32 %s21, %s28
      %p82 = scmp.eq.s32.totalorder %s81, 0
      %s84 = sadd.s32 %s83, 1
      %s85 = scalar_select %p82, %s83, %s84
      %p88 = pneg %p82
      %p89 = scmp.eq.s32.totalorder %s21, 1
      %p90 = por %p88, %p89
      %p91 = scmp.ne.s32.totalorder %s83, %s86
      %p92 = scmp.eq.s32.totalorder %s21, 0
      %p93 = por %p91, %p92
      %p94 = scmp.ne.s32.totalorder %s83, %s86
      %p95 = scmp.eq.s32.totalorder %s26, 1
      %p96 = por %p94, %p95
      %p97 = scmp.ne.s32.totalorder %s86, %s87
      %p98 = scmp.eq.s32.totalorder %s26, 0
      %p99 = por %p97, %p98
      %p100 = scmp.ne.s32.totalorder %s86, %s87
      %p101 = scmp.eq.s32.totalorder %s27, 1
      %p102 = por %p100, %p101
      %p104 = scmp.ne.s32.totalorder %s87, %s103
      %p105 = scmp.eq.s32.totalorder %s27, 0
      %p106 = por %p104, %p105
      %s107 = ssub.s32 %s21, %s28
      %p108 = scmp.eq.s32.totalorder %s107, 0
      %s110 = sadd.s32 %s109, 1
      %s111 = scalar_select %p108, %s109, %s110
      %p114 = pneg %p108
      %p115 = scmp.eq.s32.totalorder %s21, 1
      %p116 = por %p114, %p115
      %p117 = scmp.ne.s32.totalorder %s109, %s112
      %p118 = scmp.eq.s32.totalorder %s21, 0
      %p119 = por %p117, %p118
      %p120 = scmp.ne.s32.totalorder %s109, %s112
      %p121 = scmp.eq.s32.totalorder %s26, 1
      %p122 = por %p120, %p121
      %p123 = scmp.ne.s32.totalorder %s112, %s113
      %p124 = scmp.eq.s32.totalorder %s26, 0
      %p125 = por %p123, %p124
      %p126 = scmp.ne.s32.totalorder %s112, %s113
      %p127 = scmp.eq.s32.totalorder %s27, 1
      %p128 = por %p126, %p127
      %p130 = scmp.ne.s32.totalorder %s113, %s129
      %p131 = scmp.eq.s32.totalorder %s27, 0
      %p132 = por %p130, %p131
      %s134 = sadd.s32 %s133, 1
      %p137 = scmp.eq.s32.totalorder %s21, 1
      %p138 = scmp.ne.s32.totalorder %s133, %s135
      %p139 = scmp.eq.s32.totalorder %s21, 0
      %p140 = por %p138, %p139
      %p141 = scmp.ne.s32.totalorder %s133, %s135
      %p142 = scmp.eq.s32.totalorder %s26, 1
      %p143 = por %p141, %p142
      %p144 = scmp.ne.s32.totalorder %s135, %s136
      %p145 = scmp.eq.s32.totalorder %s26, 0
      %p146 = por %p144, %p145
      %p147 = scmp.ne.s32.totalorder %s135, %s136
      %p148 = scmp.eq.s32.totalorder %s27, 1
      %p149 = por %p147, %p148
      %p151 = scmp.ne.s32.totalorder %s136, %s150
      %p152 = scmp.eq.s32.totalorder %s27, 0
      %p153 = por %p151, %p152
      %s155 = sadd.s32 %s154, 1
      %p158 = scmp.eq.s32.totalorder %s21, 1
      %p159 = scmp.ne.s32.totalorder %s154, %s156
      %p160 = scmp.eq.s32.totalorder %s21, 0
      %p161 = por %p159, %p160
      %p162 = scmp.ne.s32.totalorder %s154, %s156
      %p163 = scmp.eq.s32.totalorder %s26, 1
      %p164 = por %p162, %p163
      %p165 = scmp.ne.s32.totalorder %s156, %s157
      %p166 = scmp.eq.s32.totalorder %s26, 0
      %p167 = por %p165, %p166
      %p168 = scmp.ne.s32.totalorder %s156, %s157
      %p169 = scmp.eq.s32.totalorder %s27, 1
      %p170 = por %p168, %p169
      %p172 = scmp.ne.s32.totalorder %s157, %s171
      %p173 = scmp.eq.s32.totalorder %s27, 0
      %p174 = por %p172, %p173
      %s175 = ssub.s32 %s21, %s28
      %p176 = scmp.eq.s32.totalorder %s175, 0
      %s178 = sadd.s32 %s177, 1
      %s179 = scalar_select %p176, %s177, %s178
      %p182 = pneg %p176
      %p183 = scmp.eq.s32.totalorder %s21, 1
      %p184 = por %p182, %p183
      %p185 = scmp.ne.s32.totalorder %s177, %s180
      %p186 = scmp.eq.s32.totalorder %s21, 0
      %p187 = por %p185, %p186
      %p188 = scmp.ne.s32.totalorder %s177, %s180
      %p189 = scmp.eq.s32.totalorder %s26, 1
      %p190 = por %p188, %p189
      %p191 = scmp.ne.s32.totalorder %s180, %s181
      %p192 = scmp.eq.s32.totalorder %s26, 0
      %p193 = por %p191, %p192
      %p194 = scmp.ne.s32.totalorder %s180, %s181
      %p195 = scmp.eq.s32.totalorder %s27, 1
      %p196 = por %p194, %p195
      %p198 = scmp.ne.s32.totalorder %s181, %s197
      %p199 = scmp.eq.s32.totalorder %s27, 0
      %p200 = por %p198, %p199
      %s201 = ssub.s32 %s21, %s28
      %p202 = scmp.eq.s32.totalorder %s201, 0
      %s204 = sadd.s32 %s203, 1
      %s205 = scalar_select %p202, %s203, %s204
      %p208 = pneg %p202
      %p209 = scmp.eq.s32.totalorder %s21, 1
      %p210 = por %p208, %p209
      %p211 = scmp.ne.s32.totalorder %s203, %s206
      %p212 = scmp.eq.s32.totalorder %s21, 0
      %p213 = por %p211, %p212
      %p214 = scmp.ne.s32.totalorder %s203, %s206
      %p215 = scmp.eq.s32.totalorder %s26, 1
      %p216 = por %p214, %p215
      %p217 = scmp.ne.s32.totalorder %s206, %s207
      %p218 = scmp.eq.s32.totalorder %s26, 0
      %p219 = por %p217, %p218
      %p220 = scmp.ne.s32.totalorder %s206, %s207
      %p221 = scmp.eq.s32.totalorder %s27, 1
      %p222 = por %p220, %p221
      %p224 = scmp.ne.s32.totalorder %s207, %s223
      %p225 = scmp.eq.s32.totalorder %s27, 0
      %p226 = por %p224, %p225
      %s227 = ssub.s32 %s21, %s28
      %p228 = scmp.eq.s32.totalorder %s227, 0
      %s230 = sadd.s32 %s229, 1
      %s231 = scalar_select %p228, %s229, %s230
      %p234 = pneg %p228
      %p235 = scmp.eq.s32.totalorder %s21, 1
      %p236 = por %p234, %p235
      %p237 = scmp.ne.s32.totalorder %s229, %s232
      %p238 = scmp.eq.s32.totalorder %s21, 0
      %p239 = por %p237, %p238
      %p240 = scmp.ne.s32.totalorder %s229, %s232
      %p241 = scmp.eq.s32.totalorder %s26, 1
      %p242 = por %p240, %p241
      %p243 = scmp.ne.s32.totalorder %s232, %s233
      %p244 = scmp.eq.s32.totalorder %s26, 0
      %p245 = por %p243, %p244
      %p246 = scmp.ne.s32.totalorder %s232, %s233
      %p247 = scmp.eq.s32.totalorder %s27, 1
      %p248 = por %p246, %p247
      %p250 = scmp.ne.s32.totalorder %s233, %s249
      %p251 = scmp.eq.s32.totalorder %s27, 0
      %p252 = por %p250, %p251
      %p253 = scmp.le.s32.totalorder 1, %s21
      %p254 = scmp.lt.s32.totalorder %s21, 3
      %p255 = pnand %p253, %p254
      %p256 = pneg %p255
      // Predicated region
      $region9: #{tpu_custom_call.1} parent=5 // pred_check
        _
      $region10: #{tpu_custom_call.1} parent=5 // pred_check_branch
        %258 = sbr.rel (%p255) target = $region12
      $region11: #{tpu_custom_call.1} parent=5 // pred_region
        %s259 = ssub.s32 %s21, 1
        // Predicated region
        $region13: #{tpu_custom_call.1} parent=11 // pred_check
          %p260 = pneg %p146
        $region14: #{tpu_custom_call.1} parent=11 // pred_check_branch
          %262 = sbr.rel (%p260) target = $region16
        $region15: #{tpu_custom_call.1} parent=11 // pred_region
          _
        $region16: #{tpu_custom_call.1} parent=11 // pred_fallthru
          _
        // Predicated region
        $region17: #{tpu_custom_call.1} parent=11 // pred_check
          %p263 = pneg %p167
        $region18: #{tpu_custom_call.1} parent=11 // pred_check_branch
          %265 = sbr.rel (%p263) target = $region20
        $region19: #{tpu_custom_call.1} parent=11 // pred_region
          _
        $region20: #{tpu_custom_call.1} parent=11 // pred_fallthru
          _
      $region12: #{tpu_custom_call.1} parent=5 // pred_fallthru
        _
      %p266 = scmp.lt.s32.totalorder %s21, 2
      // Predicated region
      $region21: #{tpu_custom_call.1} parent=5 // pred_check
        %p267 = pneg %p266
      $region22: #{tpu_custom_call.1} parent=5 // pred_check_branch
        %269 = sbr.rel (%p267) target = $region24
      $region23: #{tpu_custom_call.1} parent=5 // pred_region
        // Predicated region
        $region25: #{tpu_custom_call.1} parent=23 // pred_check
          %p270 = pneg %p41
        $region26: #{tpu_custom_call.1} parent=23 // pred_check_branch
          %272 = sbr.rel (%p270) target = $region28
        $region27: #{tpu_custom_call.1} parent=23 // pred_region
          %p273 = scmp.lt.s32.totalorder %s21, 1
          %s274 = scalar_select %p273, %s21, 1
          %s275 = smul.addr %s274, 10
          %s276 = smul.addr %s275, 4
          %s277 = scalar_lea.vmem %s0, %s276
        $region28: #{tpu_custom_call.1} parent=23 // pred_fallthru
          _
        // Predicated region
        $region29: #{tpu_custom_call.1} parent=23 // pred_check
          %p278 = pneg %p67
        $region30: #{tpu_custom_call.1} parent=23 // pred_check_branch
          %280 = sbr.rel (%p278) target = $region32
        $region31: #{tpu_custom_call.1} parent=23 // pred_region
          %p281 = scmp.lt.s32.totalorder %s21, 1
          %s282 = scalar_select %p281, %s21, 1
          %s283 = smul.addr %s282, 10
          %s284 = smul.addr %s283, 4
          %s285 = scalar_lea.vmem %s1, %s284
        $region32: #{tpu_custom_call.1} parent=23 // pred_fallthru
          _
        // Predicated region
        $region33: #{tpu_custom_call.1} parent=23 // pred_check
          %p286 = pneg %p93
        $region34: #{tpu_custom_call.1} parent=23 // pred_check_branch
          %288 = sbr.rel (%p286) target = $region36
        $region35: #{tpu_custom_call.1} parent=23 // pred_region
          %p289 = scmp.lt.s32.totalorder %s21, 1
          %s290 = scalar_select %p289, %s21, 1
          %s291 = smul.addr %s290, 10
          %s292 = smul.addr %s291, 4
          %s293 = scalar_lea.vmem %s2, %s292
        $region36: #{tpu_custom_call.1} parent=23 // pred_fallthru
          _
        // Predicated region
        $region37: #{tpu_custom_call.1} parent=23 // pred_check
          %p294 = pneg %p119
        $region38: #{tpu_custom_call.1} parent=23 // pred_check_branch
          %296 = sbr.rel (%p294) target = $region40
        $region39: #{tpu_custom_call.1} parent=23 // pred_region
          %p297 = scmp.lt.s32.totalorder %s21, 1
          %s298 = scalar_select %p297, %s21, 1
          %s299 = smul.addr %s298, 10
          %s300 = smul.addr %s299, 4
          %s301 = scalar_lea.vmem %s3, %s300
        $region40: #{tpu_custom_call.1} parent=23 // pred_fallthru
          _
      $region24: #{tpu_custom_call.1} parent=5 // pred_fallthru
        _
      %p302 = scmp.le.s32.totalorder 1, %s21
      %p303 = scmp.lt.s32.totalorder %s21, 3
      %p304 = pnand %p302, %p303
      %p305 = pneg %p304
      // Predicated region
      $region41: #{tpu_custom_call.1} parent=5 // pred_check
        _
      $region42: #{tpu_custom_call.1} parent=5 // pred_check_branch
        %307 = sbr.rel (%p304) target = $region44
      $region43: #{tpu_custom_call.1} parent=5 // pred_region
        %s308 = ssub.s32 %s21, 1
        %p309 = scmp.lt.s32.totalorder %s26, 1
        %s310 = scalar_select %p309, %s26, 1
        %s311 = smul.addr %s310, 10
        %s312 = smul.addr %s311, 4
        %s313 = scalar_lea.vmem %s0, %s312
        %p314 = pneg %p47
        %p315 = pneg %p44
        %p316 = scmp.lt.s32.totalorder %s26, 1
        %s317 = scalar_select %p316, %s26, 1
        %s318 = smul.addr %s317, 10
        %s319 = smul.addr %s318, 4
        %s320 = scalar_lea.vmem %s1, %s319
        %p321 = pneg %p73
        %p322 = pneg %p70
        %p323 = scmp.lt.s32.totalorder %s26, 1
        %s324 = scalar_select %p323, %s26, 1
        %s325 = smul.addr %s324, 10
        %s326 = smul.addr %s325, 4
        %s327 = scalar_lea.vmem %s2, %s326
        %p328 = pneg %p99
        %p329 = pneg %p96
        %p330 = scmp.lt.s32.totalorder %s26, 1
        %s331 = scalar_select %p330, %s26, 1
        %s332 = smul.addr %s331, 10
        %s333 = smul.addr %s332, 4
        %s334 = scalar_lea.vmem %s3, %s333
        %p335 = pneg %p125
        %p336 = pneg %p122
        %p337 = pneg %p146
        %p338 = pneg %p143
        %p339 = pneg %p167
        %p340 = pneg %p164
        %p341 = pneg %p193
        %p342 = pneg %p190
        %p343 = scmp.lt.s32.totalorder %s26, 1
        %s344 = scalar_select %p343, %s26, 1
        %s345 = smul.addr %s344, 10
        %s346 = smul.addr %s345, 8
        %s347 = scalar_lea.vmem %s6, %s346
        %p348 = pneg %p219
        %p349 = pneg %p216
        %s350 = sand.u32 %s206, 1
        %s351 = scalar_lea.sflag [#allocation4], %s350
        %s352 = sand.u32 %s206, 1
        %s353 = scalar_lea.vmem [#allocation3], %s352
        %p354 = pneg %p245
        %p355 = pneg %p242
        %s356 = sand.u32 %s232, 1
        %s357 = scalar_lea.sflag [#allocation6], %s356
        %s358 = sand.u32 %s232, 1
        %s359 = scalar_lea.vmem [#allocation5], %s358
        %p360 = scmp.lt.s32.totalorder %s26, 1
        %s361 = scalar_select %p360, %s26, 1
        %s362 = smul.addr %s361, 10
        %s363 = smul.addr %s362, 4
        %s364 = scalar_lea.vmem %s0, %s363
        %p365 = scmp.lt.s32.totalorder %s26, 1
        %s366 = scalar_select %p365, %s26, 1
        %s367 = smul.addr %s366, 10
        %s368 = smul.addr %s367, 4
        %s369 = scalar_lea.vmem %s1, %s368
        %p370 = scmp.lt.s32.totalorder %s26, 1
        %s371 = scalar_select %p370, %s26, 1
        %s372 = smul.addr %s371, 10
        %s373 = smul.addr %s372, 4
        %s374 = scalar_lea.vmem %s2, %s373
        %p375 = scmp.lt.s32.totalorder %s26, 1
        %s376 = scalar_select %p375, %s26, 1
        %s377 = smul.addr %s376, 10
        %s378 = smul.addr %s377, 4
        %s379 = scalar_lea.vmem %s3, %s378
        %p380 = scmp.lt.s32.totalorder %s26, 1
        %s381 = scalar_select %p380, %s26, 1
        %s382 = smul.addr %s381, 10
        %s383 = smul.addr %s382, 8
        %s384 = scalar_lea.vmem %s6, %s383
        %v386 = vld [vmem:[%s364] sm:$0xf]
        %v387 = vld [vmem:[%s364 + $0x4] sm:$0xf]
        %v388 = vld [vmem:[%s364 + $0x8] sm:$0xf]
        %v389 = vld [vmem:[%s364 + $0xc] sm:$0xf]
        %v390 = vld [vmem:[%s364 + $0x10] sm:$0xf]
        %v391 = vld [vmem:[%s364 + $0x14] sm:$0xf]
        %v392 = vld [vmem:[%s364 + $0x18] sm:$0xf]
        %v393 = vld [vmem:[%s364 + $0x1c] sm:$0xf]
        %v394 = vld [vmem:[%s364 + $0x20] sm:$0xf]
        %v395 = vld [vmem:[%s364 + $0x24] sm:$0xf]
        %v396 = vld [vmem:[%s369] sm:$0xf]
        %v397 = vld [vmem:[%s369 + $0x4] sm:$0xf]
        %v398 = vld [vmem:[%s369 + $0x8] sm:$0xf]
        %v399 = vld [vmem:[%s369 + $0xc] sm:$0xf]
        %v400 = vld [vmem:[%s369 + $0x10] sm:$0xf]
        %v401 = vld [vmem:[%s369 + $0x14] sm:$0xf]
        %v402 = vld [vmem:[%s369 + $0x18] sm:$0xf]
        %v403 = vld [vmem:[%s369 + $0x1c] sm:$0xf]
        %v404 = vld [vmem:[%s369 + $0x20] sm:$0xf]
        %v405 = vld [vmem:[%s369 + $0x24] sm:$0xf]
        %v406 = vmax.bf16 %v386, %v396
        %v407 = vmax.bf16 %v387, %v397
        %v408 = vmax.bf16 %v388, %v398
        %v409 = vmax.bf16 %v389, %v399
        %v410 = vmax.bf16 %v390, %v400
        %v411 = vmax.bf16 %v391, %v401
        %v412 = vmax.bf16 %v392, %v402
        %v413 = vmax.bf16 %v393, %v403
        %v414 = vmax.bf16 %v394, %v404
        %v415 = vmax.bf16 %v395, %v405
        %v416 = vld [vmem:[%s374] sm:$0xf]
        %v417 = vld [vmem:[%s374 + $0x4] sm:$0xf]
        %v418 = vld [vmem:[%s374 + $0x8] sm:$0xf]
        %v419 = vld [vmem:[%s374 + $0xc] sm:$0xf]
        %v420 = vld [vmem:[%s374 + $0x10] sm:$0xf]
        %v421 = vld [vmem:[%s374 + $0x14] sm:$0xf]
        %v422 = vld [vmem:[%s374 + $0x18] sm:$0xf]
        %v423 = vld [vmem:[%s374 + $0x1c] sm:$0xf]
        %v424 = vld [vmem:[%s374 + $0x20] sm:$0xf]
        %v425 = vld [vmem:[%s374 + $0x24] sm:$0xf]
        %v426 = vld [vmem:[%s379] sm:$0xf]
        %v427 = vld [vmem:[%s379 + $0x4] sm:$0xf]
        %v428 = vld [vmem:[%s379 + $0x8] sm:$0xf]
        %v429 = vld [vmem:[%s379 + $0xc] sm:$0xf]
        %v430 = vld [vmem:[%s379 + $0x10] sm:$0xf]
        %v431 = vld [vmem:[%s379 + $0x14] sm:$0xf]
        %v432 = vld [vmem:[%s379 + $0x18] sm:$0xf]
        %v433 = vld [vmem:[%s379 + $0x1c] sm:$0xf]
        %v434 = vld [vmem:[%s379 + $0x20] sm:$0xf]
        %v435 = vld [vmem:[%s379 + $0x24] sm:$0xf]
        %v436 = vmax.bf16 %v416, %v426
        %v437 = vmax.bf16 %v417, %v427
        %v438 = vmax.bf16 %v418, %v428
        %v439 = vmax.bf16 %v419, %v429
        %v440 = vmax.bf16 %v420, %v430
        %v441 = vmax.bf16 %v421, %v431
        %v442 = vmax.bf16 %v422, %v432
        %v443 = vmax.bf16 %v423, %v433
        %v444 = vmax.bf16 %v424, %v434
        %v445 = vmax.bf16 %v425, %v435
        %v446 = vmax.bf16 %v406, %v436
        %v447 = vmax.bf16 %v407, %v437
        %v448 = vmax.bf16 %v408, %v438
        %v449 = vmax.bf16 %v409, %v439
        %v450 = vmax.bf16 %v410, %v440
        %v451 = vmax.bf16 %v411, %v441
        %v452 = vmax.bf16 %v412, %v442
        %v453 = vmax.bf16 %v413, %v443
        %v454 = vmax.bf16 %v414, %v444
        %v455 = vmax.bf16 %v415, %v445
        %v456 = vunpack.c.l.bf16 %v446
        %v457 = vunpack.c.l.bf16 %v447
        %v458 = vunpack.c.l.bf16 %v448
        %v459 = vunpack.c.l.bf16 %v449
        %v460 = vunpack.c.l.bf16 %v450
        %v461 = vunpack.c.l.bf16 %v451
        %v462 = vunpack.c.l.bf16 %v452
        %v463 = vunpack.c.l.bf16 %v453
        %v464 = vunpack.c.l.bf16 %v454
        %v465 = vunpack.c.l.bf16 %v455
        %vm466 = vcmask 31744
        %467 = vst.msk [vmem:[#allocation2] sm:$0xff] %vm466, 0.0
        %vm468 = vcmask 26624
        %469 = vst.msk [vmem:[#allocation2 + $0x8] sm:$0x7] %vm468, 0.0
        %470 = vst.msk [vmem:[#allocation2 + $0x5b] sm:$0xff] %vm466, 0.0
        %471 = vst.msk [vmem:[#allocation2 + $0x63] sm:$0x7] %vm468, 0.0
        %472 = vst.msk [vmem:[#allocation2 + $0xb] sm:$0xff] %vm466, %v456
        %473 = vst.msk [vmem:[#allocation2 + $0x13] sm:$0xff] %vm466, %v457
        %474 = vst.msk [vmem:[#allocation2 + $0x1b] sm:$0xff] %vm466, %v458
        %475 = vst.msk [vmem:[#allocation2 + $0x23] sm:$0xff] %vm466, %v459
        %476 = vst.msk [vmem:[#allocation2 + $0x2b] sm:$0xff] %vm466, %v460
        %477 = vst.msk [vmem:[#allocation2 + $0x33] sm:$0xff] %vm466, %v461
        %478 = vst.msk [vmem:[#allocation2 + $0x3b] sm:$0xff] %vm466, %v462
        %479 = vst.msk [vmem:[#allocation2 + $0x43] sm:$0xff] %vm466, %v463
        %480 = vst.msk [vmem:[#allocation2 + $0x4b] sm:$0xff] %vm466, %v464
        %481 = vst.msk [vmem:[#allocation2 + $0x53] sm:$0xff] %vm466, %v465
        %v482 = vld [vmem:[#allocation2] sm:$0xff]
        %v483 = vld [vmem:[#allocation2 + $0x8] sm:$0xff]
        %v484 = vld [vmem:[#allocation2 + $0x10] sm:$0xff]
        %v485 = vld [vmem:[#allocation2 + $0x18] sm:$0xff]
        %v486 = vld [vmem:[#allocation2 + $0x20] sm:$0xff]
        %v487 = vld [vmem:[#allocation2 + $0x28] sm:$0xff]
        %v488 = vld [vmem:[#allocation2 + $0x30] sm:$0xff]
        %v489 = vld [vmem:[#allocation2 + $0x38] sm:$0xff]
        %v490 = vld [vmem:[#allocation2 + $0x40] sm:$0xff]
        %v491 = vld [vmem:[#allocation2 + $0x48] sm:$0xff]
        %v492 = vpack.c.bf16 %v483, %v482
        %v493 = vpack.c.bf16 %v485, %v484
        %v494 = vpack.c.bf16 %v487, %v486
        %v495 = vpack.c.bf16 %v489, %v488
        %v496 = vpack.c.bf16 %v491, %v490
        %v497 = vld [vmem:[%s4] sm:$0x3]
        %v499 = vsel %vm466, %v492, 0
        %v502 = vsel %vm466, %v493, 0
        %v505 = vsel %vm466, %v494, 0
        %v508 = vsel %vm466, %v495, 0
        %v511 = vsel %vm466, %v496, 0
        %vm513 = vcmask 1041408
        %v515 = vsel %vm513, %v497, 0
        %517 = vmatprep.subr.bf16.mxu0 0
        %518 = vmatpush1.bf16.msra.mxu0 %v515
        %519 = vmatprep.subr.bf16.mxu0 0
        %520 = vmatpush1.bf16.msra.mxu0 0
        %521 = vmatprep.subr.bf16.mxu0 0
        %522 = vmatpush1.bf16.msra.mxu0 0
        %523 = vmatprep.subr.bf16.mxu0 0
        %524 = vmatpush1.bf16.msra.mxu0 0
        %525 = vmatprep.subr.bf16.mxu0 0
        %526 = vmatpush1.bf16.msra.mxu0 0
        %527 = vmatprep.subr.bf16.mxu0 0
        %528 = vmatpush1.bf16.msra.mxu0 0
        %529 = vmatprep.subr.bf16.mxu0 0
        %530 = vmatpush1.bf16.msra.mxu0 0
        %531 = vmatprep.subr.bf16.mxu0 0
        %532 = vmatpush1.bf16.msra.mxu0 0
        %533 = vmatprep.subr.bf16.mxu0 0
        %534 = vmatpush1.bf16.msra.mxu0 0
        %535 = vmatprep.subr.bf16.mxu0 0
        %536 = vmatpush1.bf16.msra.mxu0 0
        %537 = vmatprep.subr.bf16.mxu0 0
        %538 = vmatpush1.bf16.msra.mxu0 0
        %539 = vmatprep.subr.bf16.mxu0 0
        %540 = vmatpush1.bf16.msra.mxu0 0
        %541 = vmatprep.subr.bf16.mxu0 0
        %542 = vmatpush1.bf16.msra.mxu0 0
        %543 = vmatprep.subr.bf16.mxu0 0
        %544 = vmatpush1.bf16.msra.mxu0 0
        %545 = vmatprep.subr.bf16.mxu0 0
        %546 = vmatpush1.bf16.msra.mxu0 0
        %547 = vmatprep.subr.bf16.mxu0 0
        %548 = vmatpush1.bf16.msra.mxu0 0
        %549 = vmatprep.mubr.bf16.mxu0 0
        %550 = vmatmul.mubr.bf16.gmra.mrb[0].mxu0 %v499
        %v551 = vpop.f32.mrb[0].mxu0
        %v552 = vadd.f32 0.0, %v551
        %v553 = vpop.f32.mrb[0].mxu0
        %v554 = vpop.f32.mrb[0].mxu0
        %v555 = vadd.f32 0.0, %v554
        %v556 = vpop.f32.mrb[0].mxu0
        %557 = vmatprep.mubr.bf16.mxu0 0
        %558 = vmatmul.mubr.bf16.gmra.mrb[0].mxu0 %v502
        %v559 = vpop.f32.mrb[0].mxu0
        %v560 = vadd.f32 0.0, %v559
        %v561 = vpop.f32.mrb[0].mxu0
        %v562 = vpop.f32.mrb[0].mxu0
        %v563 = vadd.f32 0.0, %v562
        %v564 = vpop.f32.mrb[0].mxu0
        %565 = vmatprep.mubr.bf16.mxu0 0
        %566 = vmatmul.mubr.bf16.gmra.mrb[0].mxu0 %v505
        %v567 = vpop.f32.mrb[0].mxu0
        %v568 = vadd.f32 0.0, %v567
        %v569 = vpop.f32.mrb[0].mxu0
        %v570 = vpop.f32.mrb[0].mxu0
        %v571 = vadd.f32 0.0, %v570
        %v572 = vpop.f32.mrb[0].mxu0
        %573 = vmatprep.mubr.bf16.mxu0 0
        %574 = vmatmul.mubr.bf16.gmra.mrb[0].mxu0 %v508
        %v575 = vpop.f32.mrb[0].mxu0
        %v576 = vadd.f32 0.0, %v575
        %v577 = vpop.f32.mrb[0].mxu0
        %v578 = vpop.f32.mrb[0].mxu0
        %v579 = vadd.f32 0.0, %v578
        %v580 = vpop.f32.mrb[0].mxu0
        %581 = vmatprep.mubr.bf16.mxu0 0
        %582 = vmatmul.mubr.bf16.gmra.mrb[0].mxu0 %v511
        %v583 = vpop.f32.mrb[0].mxu0
        %v584 = vadd.f32 0.0, %v583
        %v585 = vpop.f32.mrb[0].mxu0
        %v586 = vpop.f32.mrb[0].mxu0
        %v587 = vadd.f32 0.0, %v586
        %v588 = vpop.f32.mrb[0].mxu0
        %589 = vdwg.mxu0
        %vm590 = vcmask 64512
        %591 = vst.msk [vmem:[%s384] sm:$0xff] %vm590, %v552
        %592 = vst.msk [vmem:[%s384 + $0x8] sm:$0xff] %vm590, %v555
        %593 = vst.msk [vmem:[%s384 + $0x10] sm:$0xff] %vm590, %v560
        %594 = vst.msk [vmem:[%s384 + $0x18] sm:$0xff] %vm590, %v563
        %595 = vst.msk [vmem:[%s384 + $0x20] sm:$0xff] %vm590, %v568
        %596 = vst.msk [vmem:[%s384 + $0x28] sm:$0xff] %vm590, %v571
        %597 = vst.msk [vmem:[%s384 + $0x30] sm:$0xff] %vm590, %v576
        %598 = vst.msk [vmem:[%s384 + $0x38] sm:$0xff] %vm590, %v579
        %599 = vst.msk [vmem:[%s384 + $0x40] sm:$0xff] %vm590, %v584
        %600 = vst.msk [vmem:[%s384 + $0x48] sm:$0xff] %vm590, %v587
        %v601 = vld [vmem:[#allocation2 + $0x1] sm:$0xff]
        %v602 = vld [vmem:[#allocation2 + $0x9] sm:$0xff]
        %v603 = vld [vmem:[#allocation2 + $0x11] sm:$0xff]
        %v604 = vld [vmem:[#allocation2 + $0x19] sm:$0xff]
        %v605 = vld [vmem:[#allocation2 + $0x21] sm:$0xff]
        %v606 = vld [vmem:[#allocation2 + $0x29] sm:$0xff]
        %v607 = vld [vmem:[#allocation2 + $0x31] sm:$0xff]
        %v608 = vld [vmem:[#allocation2 + $0x39] sm:$0xff]
        %v609 = vld [vmem:[#allocation2 + $0x41] sm:$0xff]
        %v610 = vld [vmem:[#allocation2 + $0x49] sm:$0xff]
        %v611 = vpack.c.bf16 %v602, %v601
        %v612 = vpack.c.bf16 %v604, %v603
        %v613 = vpack.c.bf16 %v606, %v605
        %v614 = vpack.c.bf16 %v608, %v607
        %v615 = vpack.c.bf16 %v610, %v609
        %s616 = scalar_lea.vmem %s4, 2
        %v617 = vld [vmem:[%s616] sm:$0x3]
        %v619 = vsel %vm466, %v611, 0
        %v622 = vsel %vm466, %v612, 0
        %v625 = vsel %vm466, %v613, 0
        %v628 = vsel %vm466, %v614, 0
        %v631 = vsel %vm466, %v615, 0
        %v634 = vsel %vm513, %v617, 0
        %636 = vmatprep.subr.bf16.mxu0 0
        %637 = vmatpush1.bf16.msra.mxu0 %v634
        %638 = vmatprep.subr.bf16.mxu0 0
        %639 = vmatpush1.bf16.msra.mxu0 0
        %640 = vmatprep.subr.bf16.mxu0 0
        %641 = vmatpush1.bf16.msra.mxu0 0
        %642 = vmatprep.subr.bf16.mxu0 0
        %643 = vmatpush1.bf16.msra.mxu0 0
        %644 = vmatprep.subr.bf16.mxu0 0
        %645 = vmatpush1.bf16.msra.mxu0 0
        %646 = vmatprep.subr.bf16.mxu0 0
        %647 = vmatpush1.bf16.msra.mxu0 0
        %648 = vmatprep.subr.bf16.mxu0 0
        %649 = vmatpush1.bf16.msra.mxu0 0
        %650 = vmatprep.subr.bf16.mxu0 0
        %651 = vmatpush1.bf16.msra.mxu0 0
        %652 = vmatprep.subr.bf16.mxu0 0
        %653 = vmatpush1.bf16.msra.mxu0 0
        %654 = vmatprep.subr.bf16.mxu0 0
        %655 = vmatpush1.bf16.msra.mxu0 0
        %656 = vmatprep.subr.bf16.mxu0 0
        %657 = vmatpush1.bf16.msra.mxu0 0
        %658 = vmatprep.subr.bf16.mxu0 0
        %659 = vmatpush1.bf16.msra.mxu0 0
        %660 = vmatprep.subr.bf16.mxu0 0
        %661 = vmatpush1.bf16.msra.mxu0 0
        %662 = vmatprep.subr.bf16.mxu0 0
        %663 = vmatpush1.bf16.msra.mxu0 0
        %664 = vmatprep.subr.bf16.mxu0 0
        %665 = vmatpush1.bf16.msra.mxu0 0
        %666 = vmatprep.subr.bf16.mxu0 0
        %667 = vmatpush1.bf16.msra.mxu0 0
        %668 = vmatprep.mubr.bf16.mxu0 0
        %669 = vmatmul.mubr.bf16.gmra.mrb[0].mxu0 %v619
        %v670 = vpop.f32.mrb[0].mxu0
        %v671 = vadd.f32 0.0, %v670
        %v672 = vpop.f32.mrb[0].mxu0
        %v673 = vpop.f32.mrb[0].mxu0
        %v674 = vadd.f32 0.0, %v673
        %v675 = vpop.f32.mrb[0].mxu0
        %676 = vmatprep.mubr.bf16.mxu0 0
        %677 = vmatmul.mubr.bf16.gmra.mrb[0].mxu0 %v622
        %v678 = vpop.f32.mrb[0].mxu0
        %v679 = vadd.f32 0.0, %v678
        %v680 = vpop.f32.mrb[0].mxu0
        %v681 = vpop.f32.mrb[0].mxu0
        %v682 = vadd.f32 0.0, %v681
        %v683 = vpop.f32.mrb[0].mxu0
        %684 = vmatprep.mubr.bf16.mxu0 0
        %685 = vmatmul.mubr.bf16.gmra.mrb[0].mxu0 %v625
        %v686 = vpop.f32.mrb[0].mxu0
        %v687 = vadd.f32 0.0, %v686
        %v688 = vpop.f32.mrb[0].mxu0
        %v689 = vpop.f32.mrb[0].mxu0
        %v690 = vadd.f32 0.0, %v689
        %v691 = vpop.f32.mrb[0].mxu0
        %692 = vmatprep.mubr.bf16.mxu0 0
        %693 = vmatmul.mubr.bf16.gmra.mrb[0].mxu0 %v628
        %v694 = vpop.f32.mrb[0].mxu0
        %v695 = vadd.f32 0.0, %v694
        %v696 = vpop.f32.mrb[0].mxu0
        %v697 = vpop.f32.mrb[0].mxu0
        %v698 = vadd.f32 0.0, %v697
        %v699 = vpop.f32.mrb[0].mxu0
        %700 = vmatprep.mubr.bf16.mxu0 0
        %701 = vmatmul.mubr.bf16.gmra.mrb[0].mxu0 %v631
        %v702 = vpop.f32.mrb[0].mxu0
        %v703 = vadd.f32 0.0, %v702
        %v704 = vpop.f32.mrb[0].mxu0
        %v705 = vpop.f32.mrb[0].mxu0
        %v706 = vadd.f32 0.0, %v705
        %v707 = vpop.f32.mrb[0].mxu0
        %708 = vdwg.mxu0
        %v709 = vld [vmem:[%s384] sm:$0xff]
        %v710 = vld [vmem:[%s384 + $0x8] sm:$0xff]
        %v711 = vld [vmem:[%s384 + $0x10] sm:$0xff]
        %v712 = vld [vmem:[%s384 + $0x18] sm:$0xff]
        %v713 = vld [vmem:[%s384 + $0x20] sm:$0xff]
        %v714 = vld [vmem:[%s384 + $0x28] sm:$0xff]
        %v715 = vld [vmem:[%s384 + $0x30] sm:$0xff]
        %v716 = vld [vmem:[%s384 + $0x38] sm:$0xff]
        %v717 = vld [vmem:[%s384 + $0x40] sm:$0xff]
        %v718 = vld [vmem:[%s384 + $0x48] sm:$0xff]
        %v719 = vadd.f32 %v709, %v671
        %v720 = vadd.f32 %v710, %v674
        %v721 = vadd.f32 %v711, %v679
        %v722 = vadd.f32 %v712, %v682
        %v723 = vadd.f32 %v713, %v687
        %v724 = vadd.f32 %v714, %v690
        %v725 = vadd.f32 %v715, %v695
        %v726 = vadd.f32 %v716, %v698
        %v727 = vadd.f32 %v717, %v703
        %v728 = vadd.f32 %v718, %v706
        %729 = vst.msk [vmem:[%s384] sm:$0xff] %vm590, %v719
        %730 = vst.msk [vmem:[%s384 + $0x8] sm:$0xff] %vm590, %v720
        %731 = vst.msk [vmem:[%s384 + $0x10] sm:$0xff] %vm590, %v721
        %732 = vst.msk [vmem:[%s384 + $0x18] sm:$0xff] %vm590, %v722
        %733 = vst.msk [vmem:[%s384 + $0x20] sm:$0xff] %vm590, %v723
        %734 = vst.msk [vmem:[%s384 + $0x28] sm:$0xff] %vm590, %v724
        %735 = vst.msk [vmem:[%s384 + $0x30] sm:$0xff] %vm590, %v725
        %736 = vst.msk [vmem:[%s384 + $0x38] sm:$0xff] %vm590, %v726
        %737 = vst.msk [vmem:[%s384 + $0x40] sm:$0xff] %vm590, %v727
        %738 = vst.msk [vmem:[%s384 + $0x48] sm:$0xff] %vm590, %v728
        %v739 = vld [vmem:[#allocation2 + $0x2] sm:$0xff]
        %v740 = vld [vmem:[#allocation2 + $0xa] sm:$0xff]
        %v741 = vld [vmem:[#allocation2 + $0x12] sm:$0xff]
        %v742 = vld [vmem:[#allocation2 + $0x1a] sm:$0xff]
        %v743 = vld [vmem:[#allocation2 + $0x22] sm:$0xff]
        %v744 = vld [vmem:[#allocation2 + $0x2a] sm:$0xff]
        %v745 = vld [vmem:[#allocation2 + $0x32] sm:$0xff]
        %v746 = vld [vmem:[#allocation2 + $0x3a] sm:$0xff]
        %v747 = vld [vmem:[#allocation2 + $0x42] sm:$0xff]
        %v748 = vld [vmem:[#allocation2 + $0x4a] sm:$0xff]
        %v749 = vpack.c.bf16 %v740, %v739
        %v750 = vpack.c.bf16 %v742, %v741
        %v751 = vpack.c.bf16 %v744, %v743
        %v752 = vpack.c.bf16 %v746, %v745
        %v753 = vpack.c.bf16 %v748, %v747
        %s754 = scalar_lea.vmem %s4, 4
        %v755 = vld [vmem:[%s754] sm:$0x3]
        %v757 = vsel %vm466, %v749, 0
        %v760 = vsel %vm466, %v750, 0
        %v763 = vsel %vm466, %v751, 0
        %v766 = vsel %vm466, %v752, 0
        %v769 = vsel %vm466, %v753, 0
        %v772 = vsel %vm513, %v755, 0
        %774 = vmatprep.subr.bf16.mxu0 0
        %775 = vmatpush1.bf16.msra.mxu0 %v772
        %776 = vmatprep.subr.bf16.mxu0 0
        %777 = vmatpush1.bf16.msra.mxu0 0
        %778 = vmatprep.subr.bf16.mxu0 0
        %779 = vmatpush1.bf16.msra.mxu0 0
        %780 = vmatprep.subr.bf16.mxu0 0
        %781 = vmatpush1.bf16.msra.mxu0 0
        %782 = vmatprep.subr.bf16.mxu0 0
        %783 = vmatpush1.bf16.msra.mxu0 0
        %784 = vmatprep.subr.bf16.mxu0 0
        %785 = vmatpush1.bf16.msra.mxu0 0
        %786 = vmatprep.subr.bf16.mxu0 0
        %787 = vmatpush1.bf16.msra.mxu0 0
        %788 = vmatprep.subr.bf16.mxu0 0
        %789 = vmatpush1.bf16.msra.mxu0 0
        %790 = vmatprep.subr.bf16.mxu0 0
        %791 = vmatpush1.bf16.msra.mxu0 0
        %792 = vmatprep.subr.bf16.mxu0 0
        %793 = vmatpush1.bf16.msra.mxu0 0
        %794 = vmatprep.subr.bf16.mxu0 0
        %795 = vmatpush1.bf16.msra.mxu0 0
        %796 = vmatprep.subr.bf16.mxu0 0
        %797 = vmatpush1.bf16.msra.mxu0 0
        %798 = vmatprep.subr.bf16.mxu0 0
        %799 = vmatpush1.bf16.msra.mxu0 0
        %800 = vmatprep.subr.bf16.mxu0 0
        %801 = vmatpush1.bf16.msra.mxu0 0
        %802 = vmatprep.subr.bf16.mxu0 0
        %803 = vmatpush1.bf16.msra.mxu0 0
        %804 = vmatprep.subr.bf16.mxu0 0
        %805 = vmatpush1.bf16.msra.mxu0 0
        %806 = vmatprep.mubr.bf16.mxu0 0
        %807 = vmatmul.mubr.bf16.gmra.mrb[0].mxu0 %v757
        %v808 = vpop.f32.mrb[0].mxu0
        %v809 = vadd.f32 0.0, %v808
        %v810 = vpop.f32.mrb[0].mxu0
        %v811 = vpop.f32.mrb[0].mxu0
        %v812 = vadd.f32 0.0, %v811
        %v813 = vpop.f32.mrb[0].mxu0
        %814 = vmatprep.mubr.bf16.mxu0 0
        %815 = vmatmul.mubr.bf16.gmra.mrb[0].mxu0 %v760
        %v816 = vpop.f32.mrb[0].mxu0
        %v817 = vadd.f32 0.0, %v816
        %v818 = vpop.f32.mrb[0].mxu0
        %v819 = vpop.f32.mrb[0].mxu0
        %v820 = vadd.f32 0.0, %v819
        %v821 = vpop.f32.mrb[0].mxu0
        %822 = vmatprep.mubr.bf16.mxu0 0
        %823 = vmatmul.mubr.bf16.gmra.mrb[0].mxu0 %v763
        %v824 = vpop.f32.mrb[0].mxu0
        %v825 = vadd.f32 0.0, %v824
        %v826 = vpop.f32.mrb[0].mxu0
        %v827 = vpop.f32.mrb[0].mxu0
        %v828 = vadd.f32 0.0, %v827
        %v829 = vpop.f32.mrb[0].mxu0
        %830 = vmatprep.mubr.bf16.mxu0 0
        %831 = vmatmul.mubr.bf16.gmra.mrb[0].mxu0 %v766
        %v832 = vpop.f32.mrb[0].mxu0
        %v833 = vadd.f32 0.0, %v832
        %v834 = vpop.f32.mrb[0].mxu0
        %v835 = vpop.f32.mrb[0].mxu0
        %v836 = vadd.f32 0.0, %v835
        %v837 = vpop.f32.mrb[0].mxu0
        %838 = vmatprep.mubr.bf16.mxu0 0
        %839 = vmatmul.mubr.bf16.gmra.mrb[0].mxu0 %v769
        %v840 = vpop.f32.mrb[0].mxu0
        %v841 = vadd.f32 0.0, %v840
        %v842 = vpop.f32.mrb[0].mxu0
        %v843 = vpop.f32.mrb[0].mxu0
        %v844 = vadd.f32 0.0, %v843
        %v845 = vpop.f32.mrb[0].mxu0
        %846 = vdwg.mxu0
        %v847 = vld [vmem:[%s384] sm:$0xff]
        %v848 = vld [vmem:[%s384 + $0x8] sm:$0xff]
        %v849 = vld [vmem:[%s384 + $0x10] sm:$0xff]
        %v850 = vld [vmem:[%s384 + $0x18] sm:$0xff]
        %v851 = vld [vmem:[%s384 + $0x20] sm:$0xff]
        %v852 = vld [vmem:[%s384 + $0x28] sm:$0xff]
        %v853 = vld [vmem:[%s384 + $0x30] sm:$0xff]
        %v854 = vld [vmem:[%s384 + $0x38] sm:$0xff]
        %v855 = vld [vmem:[%s384 + $0x40] sm:$0xff]
        %v856 = vld [vmem:[%s384 + $0x48] sm:$0xff]
        %v857 = vadd.f32 %v847, %v809
        %v858 = vadd.f32 %v848, %v812
        %v859 = vadd.f32 %v849, %v817
        %v860 = vadd.f32 %v850, %v820
        %v861 = vadd.f32 %v851, %v825
        %v862 = vadd.f32 %v852, %v828
        %v863 = vadd.f32 %v853, %v833
        %v864 = vadd.f32 %v854, %v836
        %v865 = vadd.f32 %v855, %v841
        %v866 = vadd.f32 %v856, %v844
        %867 = vst.msk [vmem:[%s384] sm:$0xff] %vm590, %v857
        %868 = vst.msk [vmem:[%s384 + $0x8] sm:$0xff] %vm590, %v858
        %869 = vst.msk [vmem:[%s384 + $0x10] sm:$0xff] %vm590, %v859
        %870 = vst.msk [vmem:[%s384 + $0x18] sm:$0xff] %vm590, %v860
        %871 = vst.msk [vmem:[%s384 + $0x20] sm:$0xff] %vm590, %v861
        %872 = vst.msk [vmem:[%s384 + $0x28] sm:$0xff] %vm590, %v862
        %873 = vst.msk [vmem:[%s384 + $0x30] sm:$0xff] %vm590, %v863
        %874 = vst.msk [vmem:[%s384 + $0x38] sm:$0xff] %vm590, %v864
        %875 = vst.msk [vmem:[%s384 + $0x40] sm:$0xff] %vm590, %v865
        %876 = vst.msk [vmem:[%s384 + $0x48] sm:$0xff] %vm590, %v866
        %v877 = vld [vmem:[#allocation2 + $0xa] sm:$0xff]
        %v878 = vld [vmem:[#allocation2 + $0x12] sm:$0xff]
        %v879 = vld [vmem:[#allocation2 + $0x1a] sm:$0xff]
        %v880 = vld [vmem:[#allocation2 + $0x22] sm:$0xff]
        %v881 = vld [vmem:[#allocation2 + $0x2a] sm:$0xff]
        %v882 = vld [vmem:[#allocation2 + $0x32] sm:$0xff]
        %v883 = vld [vmem:[#allocation2 + $0x3a] sm:$0xff]
        %v884 = vld [vmem:[#allocation2 + $0x42] sm:$0xff]
        %v885 = vld [vmem:[#allocation2 + $0x4a] sm:$0xff]
        %v886 = vld [vmem:[#allocation2 + $0x52] sm:$0xff]
        %v887 = vpack.c.bf16 %v878, %v877
        %v888 = vpack.c.bf16 %v880, %v879
        %v889 = vpack.c.bf16 %v882, %v881
        %v890 = vpack.c.bf16 %v884, %v883
        %v891 = vpack.c.bf16 %v886, %v885
        %s892 = scalar_lea.vmem %s4, 6
        %v893 = vld [vmem:[%s892] sm:$0x3]
        %v895 = vsel %vm466, %v887, 0
        %v898 = vsel %vm466, %v888, 0
        %v901 = vsel %vm466, %v889, 0
        %v904 = vsel %vm466, %v890, 0
        %v907 = vsel %vm466, %v891, 0
        %v910 = vsel %vm513, %v893, 0
        %912 = vmatprep.subr.bf16.mxu0 0
        %913 = vmatpush1.bf16.msra.mxu0 %v910
        %914 = vmatprep.subr.bf16.mxu0 0
        %915 = vmatpush1.bf16.msra.mxu0 0
        %916 = vmatprep.subr.bf16.mxu0 0
        %917 = vmatpush1.bf16.msra.mxu0 0
        %918 = vmatprep.subr.bf16.mxu0 0
        %919 = vmatpush1.bf16.msra.mxu0 0
        %920 = vmatprep.subr.bf16.mxu0 0
        %921 = vmatpush1.bf16.msra.mxu0 0
        %922 = vmatprep.subr.bf16.mxu0 0
        %923 = vmatpush1.bf16.msra.mxu0 0
        %924 = vmatprep.subr.bf16.mxu0 0
        %925 = vmatpush1.bf16.msra.mxu0 0
        %926 = vmatprep.subr.bf16.mxu0 0
        %927 = vmatpush1.bf16.msra.mxu0 0
        %928 = vmatprep.subr.bf16.mxu0 0
        %929 = vmatpush1.bf16.msra.mxu0 0
        %930 = vmatprep.subr.bf16.mxu0 0
        %931 = vmatpush1.bf16.msra.mxu0 0
        %932 = vmatprep.subr.bf16.mxu0 0
        %933 = vmatpush1.bf16.msra.mxu0 0
        %934 = vmatprep.subr.bf16.mxu0 0
        %935 = vmatpush1.bf16.msra.mxu0 0
        %936 = vmatprep.subr.bf16.mxu0 0
        %937 = vmatpush1.bf16.msra.mxu0 0
        %938 = vmatprep.subr.bf16.mxu0 0
        %939 = vmatpush1.bf16.msra.mxu0 0
        %940 = vmatprep.subr.bf16.mxu0 0
        %941 = vmatpush1.bf16.msra.mxu0 0
        %942 = vmatprep.subr.bf16.mxu0 0
        %943 = vmatpush1.bf16.msra.mxu0 0
        %944 = vmatprep.mubr.bf16.mxu0 0
        %945 = vmatmul.mubr.bf16.gmra.mrb[0].mxu0 %v895
        %v946 = vpop.f32.mrb[0].mxu0
        %v947 = vadd.f32 0.0, %v946
        %v948 = vpop.f32.mrb[0].mxu0
        %v949 = vpop.f32.mrb[0].mxu0
        %v950 = vadd.f32 0.0, %v949
        %v951 = vpop.f32.mrb[0].mxu0
        %952 = vmatprep.mubr.bf16.mxu0 0
        %953 = vmatmul.mubr.bf16.gmra.mrb[0].mxu0 %v898
        %v954 = vpop.f32.mrb[0].mxu0
        %v955 = vadd.f32 0.0, %v954
        %v956 = vpop.f32.mrb[0].mxu0
        %v957 = vpop.f32.mrb[0].mxu0
        %v958 = vadd.f32 0.0, %v957
        %v959 = vpop.f32.mrb[0].mxu0
        %960 = vmatprep.mubr.bf16.mxu0 0
        %961 = vmatmul.mubr.bf16.gmra.mrb[0].mxu0 %v901
        %v962 = vpop.f32.mrb[0].mxu0
        %v963 = vadd.f32 0.0, %v962
        %v964 = vpop.f32.mrb[0].mxu0
        %v965 = vpop.f32.mrb[0].mxu0
        %v966 = vadd.f32 0.0, %v965
        %v967 = vpop.f32.mrb[0].mxu0
        %968 = vmatprep.mubr.bf16.mxu0 0
        %969 = vmatmul.mubr.bf16.gmra.mrb[0].mxu0 %v904
        %v970 = vpop.f32.mrb[0].mxu0
        %v971 = vadd.f32 0.0, %v970
        %v972 = vpop.f32.mrb[0].mxu0
        %v973 = vpop.f32.mrb[0].mxu0
        %v974 = vadd.f32 0.0, %v973
        %v975 = vpop.f32.mrb[0].mxu0
        %976 = vmatprep.mubr.bf16.mxu0 0
        %977 = vmatmul.mubr.bf16.gmra.mrb[0].mxu0 %v907
        %v978 = vpop.f32.mrb[0].mxu0
        %v979 = vadd.f32 0.0, %v978
        %v980 = vpop.f32.mrb[0].mxu0
        %v981 = vpop.f32.mrb[0].mxu0
        %v982 = vadd.f32 0.0, %v981
        %v983 = vpop.f32.mrb[0].mxu0
        %984 = vdwg.mxu0
        %v985 = vld [vmem:[%s384] sm:$0xff]
        %v986 = vld [vmem:[%s384 + $0x8] sm:$0xff]
        %v987 = vld [vmem:[%s384 + $0x10] sm:$0xff]
        %v988 = vld [vmem:[%s384 + $0x18] sm:$0xff]
        %v989 = vld [vmem:[%s384 + $0x20] sm:$0xff]
        %v990 = vld [vmem:[%s384 + $0x28] sm:$0xff]
        %v991 = vld [vmem:[%s384 + $0x30] sm:$0xff]
        %v992 = vld [vmem:[%s384 + $0x38] sm:$0xff]
        %v993 = vld [vmem:[%s384 + $0x40] sm:$0xff]
        %v994 = vld [vmem:[%s384 + $0x48] sm:$0xff]
        %v995 = vadd.f32 %v985, %v947
        %v996 = vadd.f32 %v986, %v950
        %v997 = vadd.f32 %v987, %v955
        %v998 = vadd.f32 %v988, %v958
        %v999 = vadd.f32 %v989, %v963
        %v1000 = vadd.f32 %v990, %v966
        %v1001 = vadd.f32 %v991, %v971
        %v1002 = vadd.f32 %v992, %v974
        %v1003 = vadd.f32 %v993, %v979
        %v1004 = vadd.f32 %v994, %v982
        %1005 = vst.msk [vmem:[%s384] sm:$0xff] %vm590, %v995
        %1006 = vst.msk [vmem:[%s384 + $0x8] sm:$0xff] %vm590, %v996
        %1007 = vst.msk [vmem:[%s384 + $0x10] sm:$0xff] %vm590, %v997
        %1008 = vst.msk [vmem:[%s384 + $0x18] sm:$0xff] %vm590, %v998
        %1009 = vst.msk [vmem:[%s384 + $0x20] sm:$0xff] %vm590, %v999
        %1010 = vst.msk [vmem:[%s384 + $0x28] sm:$0xff] %vm590, %v1000
        %1011 = vst.msk [vmem:[%s384 + $0x30] sm:$0xff] %vm590, %v1001
        %1012 = vst.msk [vmem:[%s384 + $0x38] sm:$0xff] %vm590, %v1002
        %1013 = vst.msk [vmem:[%s384 + $0x40] sm:$0xff] %vm590, %v1003
        %1014 = vst.msk [vmem:[%s384 + $0x48] sm:$0xff] %vm590, %v1004
        %v1015 = vld [vmem:[#allocation2 + $0xb] sm:$0xff]
        %v1016 = vld [vmem:[#allocation2 + $0x13] sm:$0xff]
        %v1017 = vld [vmem:[#allocation2 + $0x1b] sm:$0xff]
        %v1018 = vld [vmem:[#allocation2 + $0x23] sm:$0xff]
        %v1019 = vld [vmem:[#allocation2 + $0x2b] sm:$0xff]
        %v1020 = vld [vmem:[#allocation2 + $0x33] sm:$0xff]
        %v1021 = vld [vmem:[#allocation2 + $0x3b] sm:$0xff]
        %v1022 = vld [vmem:[#allocation2 + $0x43] sm:$0xff]
        %v1023 = vld [vmem:[#allocation2 + $0x4b] sm:$0xff]
        %v1024 = vld [vmem:[#allocation2 + $0x53] sm:$0xff]
        %v1025 = vpack.c.bf16 %v1016, %v1015
        %v1026 = vpack.c.bf16 %v1018, %v1017
        %v1027 = vpack.c.bf16 %v1020, %v1019
        %v1028 = vpack.c.bf16 %v1022, %v1021
        %v1029 = vpack.c.bf16 %v1024, %v1023
        %s1030 = scalar_lea.vmem %s4, 8
        %v1031 = vld [vmem:[%s1030] sm:$0x3]
        %v1033 = vsel %vm466, %v1025, 0
        %v1036 = vsel %vm466, %v1026, 0
        %v1039 = vsel %vm466, %v1027, 0
        %v1042 = vsel %vm466, %v1028, 0
        %v1045 = vsel %vm466, %v1029, 0
        %v1048 = vsel %vm513, %v1031, 0
        %1050 = vmatprep.subr.bf16.mxu0 0
        %1051 = vmatpush1.bf16.msra.mxu0 %v1048
        %1052 = vmatprep.subr.bf16.mxu0 0
        %1053 = vmatpush1.bf16.msra.mxu0 0
        %1054 = vmatprep.subr.bf16.mxu0 0
        %1055 = vmatpush1.bf16.msra.mxu0 0
        %1056 = vmatprep.subr.bf16.mxu0 0
        %1057 = vmatpush1.bf16.msra.mxu0 0
        %1058 = vmatprep.subr.bf16.mxu0 0
        %1059 = vmatpush1.bf16.msra.mxu0 0
        %1060 = vmatprep.subr.bf16.mxu0 0
        %1061 = vmatpush1.bf16.msra.mxu0 0
        %1062 = vmatprep.subr.bf16.mxu0 0
        %1063 = vmatpush1.bf16.msra.mxu0 0
        %1064 = vmatprep.subr.bf16.mxu0 0
        %1065 = vmatpush1.bf16.msra.mxu0 0
        %1066 = vmatprep.subr.bf16.mxu0 0
        %1067 = vmatpush1.bf16.msra.mxu0 0
        %1068 = vmatprep.subr.bf16.mxu0 0
        %1069 = vmatpush1.bf16.msra.mxu0 0
        %1070 = vmatprep.subr.bf16.mxu0 0
        %1071 = vmatpush1.bf16.msra.mxu0 0
        %1072 = vmatprep.subr.bf16.mxu0 0
        %1073 = vmatpush1.bf16.msra.mxu0 0
        %1074 = vmatprep.subr.bf16.mxu0 0
        %1075 = vmatpush1.bf16.msra.mxu0 0
        %1076 = vmatprep.subr.bf16.mxu0 0
        %1077 = vmatpush1.bf16.msra.mxu0 0
        %1078 = vmatprep.subr.bf16.mxu0 0
        %1079 = vmatpush1.bf16.msra.mxu0 0
        %1080 = vmatprep.subr.bf16.mxu0 0
        %1081 = vmatpush1.bf16.msra.mxu0 0
        %1082 = vmatprep.mubr.bf16.mxu0 0
        %1083 = vmatmul.mubr.bf16.gmra.mrb[0].mxu0 %v1033
        %v1084 = vpop.f32.mrb[0].mxu0
        %v1085 = vadd.f32 0.0, %v1084
        %v1086 = vpop.f32.mrb[0].mxu0
        %v1087 = vpop.f32.mrb[0].mxu0
        %v1088 = vadd.f32 0.0, %v1087
        %v1089 = vpop.f32.mrb[0].mxu0
        %1090 = vmatprep.mubr.bf16.mxu0 0
        %1091 = vmatmul.mubr.bf16.gmra.mrb[0].mxu0 %v1036
        %v1092 = vpop.f32.mrb[0].mxu0
        %v1093 = vadd.f32 0.0, %v1092
        %v1094 = vpop.f32.mrb[0].mxu0
        %v1095 = vpop.f32.mrb[0].mxu0
        %v1096 = vadd.f32 0.0, %v1095
        %v1097 = vpop.f32.mrb[0].mxu0
        %1098 = vmatprep.mubr.bf16.mxu0 0
        %1099 = vmatmul.mubr.bf16.gmra.mrb[0].mxu0 %v1039
        %v1100 = vpop.f32.mrb[0].mxu0
        %v1101 = vadd.f32 0.0, %v1100
        %v1102 = vpop.f32.mrb[0].mxu0
        %v1103 = vpop.f32.mrb[0].mxu0
        %v1104 = vadd.f32 0.0, %v1103
        %v1105 = vpop.f32.mrb[0].mxu0
        %1106 = vmatprep.mubr.bf16.mxu0 0
        %1107 = vmatmul.mubr.bf16.gmra.mrb[0].mxu0 %v1042
        %v1108 = vpop.f32.mrb[0].mxu0
        %v1109 = vadd.f32 0.0, %v1108
        %v1110 = vpop.f32.mrb[0].mxu0
        %v1111 = vpop.f32.mrb[0].mxu0
        %v1112 = vadd.f32 0.0, %v1111
        %v1113 = vpop.f32.mrb[0].mxu0
        %1114 = vmatprep.mubr.bf16.mxu0 0
        %1115 = vmatmul.mubr.bf16.gmra.mrb[0].mxu0 %v1045
        %v1116 = vpop.f32.mrb[0].mxu0
        %v1117 = vadd.f32 0.0, %v1116
        %v1118 = vpop.f32.mrb[0].mxu0
        %v1119 = vpop.f32.mrb[0].mxu0
        %v1120 = vadd.f32 0.0, %v1119
        %v1121 = vpop.f32.mrb[0].mxu0
        %1122 = vdwg.mxu0
        %v1123 = vld [vmem:[%s384] sm:$0xff]
        %v1124 = vld [vmem:[%s384 + $0x8] sm:$0xff]
        %v1125 = vld [vmem:[%s384 + $0x10] sm:$0xff]
        %v1126 = vld [vmem:[%s384 + $0x18] sm:$0xff]
        %v1127 = vld [vmem:[%s384 + $0x20] sm:$0xff]
        %v1128 = vld [vmem:[%s384 + $0x28] sm:$0xff]
        %v1129 = vld [vmem:[%s384 + $0x30] sm:$0xff]
        %v1130 = vld [vmem:[%s384 + $0x38] sm:$0xff]
        %v1131 = vld [vmem:[%s384 + $0x40] sm:$0xff]
        %v1132 = vld [vmem:[%s384 + $0x48] sm:$0xff]
        %v1133 = vadd.f32 %v1123, %v1085
        %v1134 = vadd.f32 %v1124, %v1088
        %v1135 = vadd.f32 %v1125, %v1093
        %v1136 = vadd.f32 %v1126, %v1096
        %v1137 = vadd.f32 %v1127, %v1101
        %v1138 = vadd.f32 %v1128, %v1104
        %v1139 = vadd.f32 %v1129, %v1109
        %v1140 = vadd.f32 %v1130, %v1112
        %v1141 = vadd.f32 %v1131, %v1117
        %v1142 = vadd.f32 %v1132, %v1120
        %1143 = vst.msk [vmem:[%s384] sm:$0xff] %vm590, %v1133
        %1144 = vst.msk [vmem:[%s384 + $0x8] sm:$0xff] %vm590, %v1134
        %1145 = vst.msk [vmem:[%s384 + $0x10] sm:$0xff] %vm590, %v1135
        %1146 = vst.msk [vmem:[%s384 + $0x18] sm:$0xff] %vm590, %v1136
        %1147 = vst.msk [vmem:[%s384 + $0x20] sm:$0xff] %vm590, %v1137
        %1148 = vst.msk [vmem:[%s384 + $0x28] sm:$0xff] %vm590, %v1138
        %1149 = vst.msk [vmem:[%s384 + $0x30] sm:$0xff] %vm590, %v1139
        %1150 = vst.msk [vmem:[%s384 + $0x38] sm:$0xff] %vm590, %v1140
        %1151 = vst.msk [vmem:[%s384 + $0x40] sm:$0xff] %vm590, %v1141
        %1152 = vst.msk [vmem:[%s384 + $0x48] sm:$0xff] %vm590, %v1142
        %v1153 = vld [vmem:[#allocation2 + $0xc] sm:$0xff]
        %v1154 = vld [vmem:[#allocation2 + $0x14] sm:$0xff]
        %v1155 = vld [vmem:[#allocation2 + $0x1c] sm:$0xff]
        %v1156 = vld [vmem:[#allocation2 + $0x24] sm:$0xff]
        %v1157 = vld [vmem:[#allocation2 + $0x2c] sm:$0xff]
        %v1158 = vld [vmem:[#allocation2 + $0x34] sm:$0xff]
        %v1159 = vld [vmem:[#allocation2 + $0x3c] sm:$0xff]
        %v1160 = vld [vmem:[#allocation2 + $0x44] sm:$0xff]
        %v1161 = vld [vmem:[#allocation2 + $0x4c] sm:$0xff]
        %v1162 = vld [vmem:[#allocation2 + $0x54] sm:$0xff]
        %v1163 = vpack.c.bf16 %v1154, %v1153
        %v1164 = vpack.c.bf16 %v1156, %v1155
        %v1165 = vpack.c.bf16 %v1158, %v1157
        %v1166 = vpack.c.bf16 %v1160, %v1159
        %v1167 = vpack.c.bf16 %v1162, %v1161
        %s1168 = scalar_lea.vmem %s4, 10
        %v1169 = vld [vmem:[%s1168] sm:$0x3]
        %v1171 = vsel %vm466, %v1163, 0
        %v1174 = vsel %vm466, %v1164, 0
        %v1177 = vsel %vm466, %v1165, 0
        %v1180 = vsel %vm466, %v1166, 0
        %v1183 = vsel %vm466, %v1167, 0
        %v1186 = vsel %vm513, %v1169, 0
        %1188 = vmatprep.subr.bf16.mxu0 0
        %1189 = vmatpush1.bf16.msra.mxu0 %v1186
        %1190 = vmatprep.subr.bf16.mxu0 0
        %1191 = vmatpush1.bf16.msra.mxu0 0
        %1192 = vmatprep.subr.bf16.mxu0 0
        %1193 = vmatpush1.bf16.msra.mxu0 0
        %1194 = vmatprep.subr.bf16.mxu0 0
        %1195 = vmatpush1.bf16.msra.mxu0 0
        %1196 = vmatprep.subr.bf16.mxu0 0
        %1197 = vmatpush1.bf16.msra.mxu0 0
        %1198 = vmatprep.subr.bf16.mxu0 0
        %1199 = vmatpush1.bf16.msra.mxu0 0
        %1200 = vmatprep.subr.bf16.mxu0 0
        %1201 = vmatpush1.bf16.msra.mxu0 0
        %1202 = vmatprep.subr.bf16.mxu0 0
        %1203 = vmatpush1.bf16.msra.mxu0 0
        %1204 = vmatprep.subr.bf16.mxu0 0
        %1205 = vmatpush1.bf16.msra.mxu0 0
        %1206 = vmatprep.subr.bf16.mxu0 0
        %1207 = vmatpush1.bf16.msra.mxu0 0
        %1208 = vmatprep.subr.bf16.mxu0 0
        %1209 = vmatpush1.bf16.msra.mxu0 0
        %1210 = vmatprep.subr.bf16.mxu0 0
        %1211 = vmatpush1.bf16.msra.mxu0 0
        %1212 = vmatprep.subr.bf16.mxu0 0
        %1213 = vmatpush1.bf16.msra.mxu0 0
        %1214 = vmatprep.subr.bf16.mxu0 0
        %1215 = vmatpush1.bf16.msra.mxu0 0
        %1216 = vmatprep.subr.bf16.mxu0 0
        %1217 = vmatpush1.bf16.msra.mxu0 0
        %1218 = vmatprep.subr.bf16.mxu0 0
        %1219 = vmatpush1.bf16.msra.mxu0 0
        %1220 = vmatprep.mubr.bf16.mxu0 0
        %1221 = vmatmul.mubr.bf16.gmra.mrb[0].mxu0 %v1171
        %v1222 = vpop.f32.mrb[0].mxu0
        %v1223 = vadd.f32 0.0, %v1222
        %v1224 = vpop.f32.mrb[0].mxu0
        %v1225 = vpop.f32.mrb[0].mxu0
        %v1226 = vadd.f32 0.0, %v1225
        %v1227 = vpop.f32.mrb[0].mxu0
        %1228 = vmatprep.mubr.bf16.mxu0 0
        %1229 = vmatmul.mubr.bf16.gmra.mrb[0].mxu0 %v1174
        %v1230 = vpop.f32.mrb[0].mxu0
        %v1231 = vadd.f32 0.0, %v1230
        %v1232 = vpop.f32.mrb[0].mxu0
        %v1233 = vpop.f32.mrb[0].mxu0
        %v1234 = vadd.f32 0.0, %v1233
        %v1235 = vpop.f32.mrb[0].mxu0
        %1236 = vmatprep.mubr.bf16.mxu0 0
        %1237 = vmatmul.mubr.bf16.gmra.mrb[0].mxu0 %v1177
        %v1238 = vpop.f32.mrb[0].mxu0
        %v1239 = vadd.f32 0.0, %v1238
        %v1240 = vpop.f32.mrb[0].mxu0
        %v1241 = vpop.f32.mrb[0].mxu0
        %v1242 = vadd.f32 0.0, %v1241
        %v1243 = vpop.f32.mrb[0].mxu0
        %1244 = vmatprep.mubr.bf16.mxu0 0
        %1245 = vmatmul.mubr.bf16.gmra.mrb[0].mxu0 %v1180
        %v1246 = vpop.f32.mrb[0].mxu0
        %v1247 = vadd.f32 0.0, %v1246
        %v1248 = vpop.f32.mrb[0].mxu0
        %v1249 = vpop.f32.mrb[0].mxu0
        %v1250 = vadd.f32 0.0, %v1249
        %v1251 = vpop.f32.mrb[0].mxu0
        %1252 = vmatprep.mubr.bf16.mxu0 0
        %1253 = vmatmul.mubr.bf16.gmra.mrb[0].mxu0 %v1183
        %v1254 = vpop.f32.mrb[0].mxu0
        %v1255 = vadd.f32 0.0, %v1254
        %v1256 = vpop.f32.mrb[0].mxu0
        %v1257 = vpop.f32.mrb[0].mxu0
        %v1258 = vadd.f32 0.0, %v1257
        %v1259 = vpop.f32.mrb[0].mxu0
        %1260 = vdwg.mxu0
        %v1261 = vld [vmem:[%s384] sm:$0xff]
        %v1262 = vld [vmem:[%s384 + $0x8] sm:$0xff]
        %v1263 = vld [vmem:[%s384 + $0x10] sm:$0xff]
        %v1264 = vld [vmem:[%s384 + $0x18] sm:$0xff]
        %v1265 = vld [vmem:[%s384 + $0x20] sm:$0xff]
        %v1266 = vld [vmem:[%s384 + $0x28] sm:$0xff]
        %v1267 = vld [vmem:[%s384 + $0x30] sm:$0xff]
        %v1268 = vld [vmem:[%s384 + $0x38] sm:$0xff]
        %v1269 = vld [vmem:[%s384 + $0x40] sm:$0xff]
        %v1270 = vld [vmem:[%s384 + $0x48] sm:$0xff]
        %v1271 = vadd.f32 %v1261, %v1223
        %v1272 = vadd.f32 %v1262, %v1226
        %v1273 = vadd.f32 %v1263, %v1231
        %v1274 = vadd.f32 %v1264, %v1234
        %v1275 = vadd.f32 %v1265, %v1239
        %v1276 = vadd.f32 %v1266, %v1242
        %v1277 = vadd.f32 %v1267, %v1247
        %v1278 = vadd.f32 %v1268, %v1250
        %v1279 = vadd.f32 %v1269, %v1255
        %v1280 = vadd.f32 %v1270, %v1258
        %1281 = vst.msk [vmem:[%s384] sm:$0xff] %vm590, %v1271
        %1282 = vst.msk [vmem:[%s384 + $0x8] sm:$0xff] %vm590, %v1272
        %1283 = vst.msk [vmem:[%s384 + $0x10] sm:$0xff] %vm590, %v1273
        %1284 = vst.msk [vmem:[%s384 + $0x18] sm:$0xff] %vm590, %v1274
        %1285 = vst.msk [vmem:[%s384 + $0x20] sm:$0xff] %vm590, %v1275
        %1286 = vst.msk [vmem:[%s384 + $0x28] sm:$0xff] %vm590, %v1276
        %1287 = vst.msk [vmem:[%s384 + $0x30] sm:$0xff] %vm590, %v1277
        %1288 = vst.msk [vmem:[%s384 + $0x38] sm:$0xff] %vm590, %v1278
        %1289 = vst.msk [vmem:[%s384 + $0x40] sm:$0xff] %vm590, %v1279
        %1290 = vst.msk [vmem:[%s384 + $0x48] sm:$0xff] %vm590, %v1280
        %v1291 = vld [vmem:[#allocation2 + $0x14] sm:$0xff]
        %v1292 = vld [vmem:[#allocation2 + $0x1c] sm:$0xff]
        %v1293 = vld [vmem:[#allocation2 + $0x24] sm:$0xff]
        %v1294 = vld [vmem:[#allocation2 + $0x2c] sm:$0xff]
        %v1295 = vld [vmem:[#allocation2 + $0x34] sm:$0xff]
        %v1296 = vld [vmem:[#allocation2 + $0x3c] sm:$0xff]
        %v1297 = vld [vmem:[#allocation2 + $0x44] sm:$0xff]
        %v1298 = vld [vmem:[#allocation2 + $0x4c] sm:$0xff]
        %v1299 = vld [vmem:[#allocation2 + $0x54] sm:$0xff]
        %v1300 = vld [vmem:[#allocation2 + $0x5c] sm:$0xff]
        %v1301 = vpack.c.bf16 %v1292, %v1291
        %v1302 = vpack.c.bf16 %v1294, %v1293
        %v1303 = vpack.c.bf16 %v1296, %v1295
        %v1304 = vpack.c.bf16 %v1298, %v1297
        %v1305 = vpack.c.bf16 %v1300, %v1299
        %s1306 = scalar_lea.vmem %s4, 12
        %v1307 = vld [vmem:[%s1306] sm:$0x3]
        %v1309 = vsel %vm466, %v1301, 0
        %v1312 = vsel %vm466, %v1302, 0
        %v1315 = vsel %vm466, %v1303, 0
        %v1318 = vsel %vm466, %v1304, 0
        %v1321 = vsel %vm466, %v1305, 0
        %v1324 = vsel %vm513, %v1307, 0
        %1326 = vmatprep.subr.bf16.mxu0 0
        %1327 = vmatpush1.bf16.msra.mxu0 %v1324
        %1328 = vmatprep.subr.bf16.mxu0 0
        %1329 = vmatpush1.bf16.msra.mxu0 0
        %1330 = vmatprep.subr.bf16.mxu0 0
        %1331 = vmatpush1.bf16.msra.mxu0 0
        %1332 = vmatprep.subr.bf16.mxu0 0
        %1333 = vmatpush1.bf16.msra.mxu0 0
        %1334 = vmatprep.subr.bf16.mxu0 0
        %1335 = vmatpush1.bf16.msra.mxu0 0
        %1336 = vmatprep.subr.bf16.mxu0 0
        %1337 = vmatpush1.bf16.msra.mxu0 0
        %1338 = vmatprep.subr.bf16.mxu0 0
        %1339 = vmatpush1.bf16.msra.mxu0 0
        %1340 = vmatprep.subr.bf16.mxu0 0
        %1341 = vmatpush1.bf16.msra.mxu0 0
        %1342 = vmatprep.subr.bf16.mxu0 0
        %1343 = vmatpush1.bf16.msra.mxu0 0
        %1344 = vmatprep.subr.bf16.mxu0 0
        %1345 = vmatpush1.bf16.msra.mxu0 0
        %1346 = vmatprep.subr.bf16.mxu0 0
        %1347 = vmatpush1.bf16.msra.mxu0 0
        %1348 = vmatprep.subr.bf16.mxu0 0
        %1349 = vmatpush1.bf16.msra.mxu0 0
        %1350 = vmatprep.subr.bf16.mxu0 0
        %1351 = vmatpush1.bf16.msra.mxu0 0
        %1352 = vmatprep.subr.bf16.mxu0 0
        %1353 = vmatpush1.bf16.msra.mxu0 0
        %1354 = vmatprep.subr.bf16.mxu0 0
        %1355 = vmatpush1.bf16.msra.mxu0 0
        %1356 = vmatprep.subr.bf16.mxu0 0
        %1357 = vmatpush1.bf16.msra.mxu0 0
        %1358 = vmatprep.mubr.bf16.mxu0 0
        %1359 = vmatmul.mubr.bf16.gmra.mrb[0].mxu0 %v1309
        %v1360 = vpop.f32.mrb[0].mxu0
        %v1361 = vadd.f32 0.0, %v1360
        %v1362 = vpop.f32.mrb[0].mxu0
        %v1363 = vpop.f32.mrb[0].mxu0
        %v1364 = vadd.f32 0.0, %v1363
        %v1365 = vpop.f32.mrb[0].mxu0
        %1366 = vmatprep.mubr.bf16.mxu0 0
        %1367 = vmatmul.mubr.bf16.gmra.mrb[0].mxu0 %v1312
        %v1368 = vpop.f32.mrb[0].mxu0
        %v1369 = vadd.f32 0.0, %v1368
        %v1370 = vpop.f32.mrb[0].mxu0
        %v1371 = vpop.f32.mrb[0].mxu0
        %v1372 = vadd.f32 0.0, %v1371
        %v1373 = vpop.f32.mrb[0].mxu0
        %1374 = vmatprep.mubr.bf16.mxu0 0
        %1375 = vmatmul.mubr.bf16.gmra.mrb[0].mxu0 %v1315
        %v1376 = vpop.f32.mrb[0].mxu0
        %v1377 = vadd.f32 0.0, %v1376
        %v1378 = vpop.f32.mrb[0].mxu0
        %v1379 = vpop.f32.mrb[0].mxu0
        %v1380 = vadd.f32 0.0, %v1379
        %v1381 = vpop.f32.mrb[0].mxu0
        %1382 = vmatprep.mubr.bf16.mxu0 0
        %1383 = vmatmul.mubr.bf16.gmra.mrb[0].mxu0 %v1318
        %v1384 = vpop.f32.mrb[0].mxu0
        %v1385 = vadd.f32 0.0, %v1384
        %v1386 = vpop.f32.mrb[0].mxu0
        %v1387 = vpop.f32.mrb[0].mxu0
        %v1388 = vadd.f32 0.0, %v1387
        %v1389 = vpop.f32.mrb[0].mxu0
        %1390 = vmatprep.mubr.bf16.mxu0 0
        %1391 = vmatmul.mubr.bf16.gmra.mrb[0].mxu0 %v1321
        %v1392 = vpop.f32.mrb[0].mxu0
        %v1393 = vadd.f32 0.0, %v1392
        %v1394 = vpop.f32.mrb[0].mxu0
        %v1395 = vpop.f32.mrb[0].mxu0
        %v1396 = vadd.f32 0.0, %v1395
        %v1397 = vpop.f32.mrb[0].mxu0
        %1398 = vdwg.mxu0
        %v1399 = vld [vmem:[%s384] sm:$0xff]
        %v1400 = vld [vmem:[%s384 + $0x8] sm:$0xff]
        %v1401 = vld [vmem:[%s384 + $0x10] sm:$0xff]
        %v1402 = vld [vmem:[%s384 + $0x18] sm:$0xff]
        %v1403 = vld [vmem:[%s384 + $0x20] sm:$0xff]
        %v1404 = vld [vmem:[%s384 + $0x28] sm:$0xff]
        %v1405 = vld [vmem:[%s384 + $0x30] sm:$0xff]
        %v1406 = vld [vmem:[%s384 + $0x38] sm:$0xff]
        %v1407 = vld [vmem:[%s384 + $0x40] sm:$0xff]
        %v1408 = vld [vmem:[%s384 + $0x48] sm:$0xff]
        %v1409 = vadd.f32 %v1399, %v1361
        %v1410 = vadd.f32 %v1400, %v1364
        %v1411 = vadd.f32 %v1401, %v1369
        %v1412 = vadd.f32 %v1402, %v1372
        %v1413 = vadd.f32 %v1403, %v1377
        %v1414 = vadd.f32 %v1404, %v1380
        %v1415 = vadd.f32 %v1405, %v1385
        %v1416 = vadd.f32 %v1406, %v1388
        %v1417 = vadd.f32 %v1407, %v1393
        %v1418 = vadd.f32 %v1408, %v1396
        %1419 = vst.msk [vmem:[%s384] sm:$0xff] %vm590, %v1409
        %1420 = vst.msk [vmem:[%s384 + $0x8] sm:$0xff] %vm590, %v1410
        %1421 = vst.msk [vmem:[%s384 + $0x10] sm:$0xff] %vm590, %v1411
        %1422 = vst.msk [vmem:[%s384 + $0x18] sm:$0xff] %vm590, %v1412
        %1423 = vst.msk [vmem:[%s384 + $0x20] sm:$0xff] %vm590, %v1413
        %1424 = vst.msk [vmem:[%s384 + $0x28] sm:$0xff] %vm590, %v1414
        %1425 = vst.msk [vmem:[%s384 + $0x30] sm:$0xff] %vm590, %v1415
        %1426 = vst.msk [vmem:[%s384 + $0x38] sm:$0xff] %vm590, %v1416
        %1427 = vst.msk [vmem:[%s384 + $0x40] sm:$0xff] %vm590, %v1417
        %1428 = vst.msk [vmem:[%s384 + $0x48] sm:$0xff] %vm590, %v1418
        %v1429 = vld [vmem:[#allocation2 + $0x15] sm:$0xff]
        %v1430 = vld [vmem:[#allocation2 + $0x1d] sm:$0xff]
        %v1431 = vld [vmem:[#allocation2 + $0x25] sm:$0xff]
        %v1432 = vld [vmem:[#allocation2 + $0x2d] sm:$0xff]
        %v1433 = vld [vmem:[#allocation2 + $0x35] sm:$0xff]
        %v1434 = vld [vmem:[#allocation2 + $0x3d] sm:$0xff]
        %v1435 = vld [vmem:[#allocation2 + $0x45] sm:$0xff]
        %v1436 = vld [vmem:[#allocation2 + $0x4d] sm:$0xff]
        %v1437 = vld [vmem:[#allocation2 + $0x55] sm:$0xff]
        %v1438 = vld [vmem:[#allocation2 + $0x5d] sm:$0xff]
        %v1439 = vpack.c.bf16 %v1430, %v1429
        %v1440 = vpack.c.bf16 %v1432, %v1431
        %v1441 = vpack.c.bf16 %v1434, %v1433
        %v1442 = vpack.c.bf16 %v1436, %v1435
        %v1443 = vpack.c.bf16 %v1438, %v1437
        %s1444 = scalar_lea.vmem %s4, 14
        %v1445 = vld [vmem:[%s1444] sm:$0x3]
        %v1447 = vsel %vm466, %v1439, 0
        %v1450 = vsel %vm466, %v1440, 0
        %v1453 = vsel %vm466, %v1441, 0
        %v1456 = vsel %vm466, %v1442, 0
        %v1459 = vsel %vm466, %v1443, 0
        %v1462 = vsel %vm513, %v1445, 0
        %1464 = vmatprep.subr.bf16.mxu0 0
        %1465 = vmatpush1.bf16.msra.mxu0 %v1462
        %1466 = vmatprep.subr.bf16.mxu0 0
        %1467 = vmatpush1.bf16.msra.mxu0 0
        %1468 = vmatprep.subr.bf16.mxu0 0
        %1469 = vmatpush1.bf16.msra.mxu0 0
        %1470 = vmatprep.subr.bf16.mxu0 0
        %1471 = vmatpush1.bf16.msra.mxu0 0
        %1472 = vmatprep.subr.bf16.mxu0 0
        %1473 = vmatpush1.bf16.msra.mxu0 0
        %1474 = vmatprep.subr.bf16.mxu0 0
        %1475 = vmatpush1.bf16.msra.mxu0 0
        %1476 = vmatprep.subr.bf16.mxu0 0
        %1477 = vmatpush1.bf16.msra.mxu0 0
        %1478 = vmatprep.subr.bf16.mxu0 0
        %1479 = vmatpush1.bf16.msra.mxu0 0
        %1480 = vmatprep.subr.bf16.mxu0 0
        %1481 = vmatpush1.bf16.msra.mxu0 0
        %1482 = vmatprep.subr.bf16.mxu0 0
        %1483 = vmatpush1.bf16.msra.mxu0 0
        %1484 = vmatprep.subr.bf16.mxu0 0
        %1485 = vmatpush1.bf16.msra.mxu0 0
        %1486 = vmatprep.subr.bf16.mxu0 0
        %1487 = vmatpush1.bf16.msra.mxu0 0
        %1488 = vmatprep.subr.bf16.mxu0 0
        %1489 = vmatpush1.bf16.msra.mxu0 0
        %1490 = vmatprep.subr.bf16.mxu0 0
        %1491 = vmatpush1.bf16.msra.mxu0 0
        %1492 = vmatprep.subr.bf16.mxu0 0
        %1493 = vmatpush1.bf16.msra.mxu0 0
        %1494 = vmatprep.subr.bf16.mxu0 0
        %1495 = vmatpush1.bf16.msra.mxu0 0
        %1496 = vmatprep.mubr.bf16.mxu0 0
        %1497 = vmatmul.mubr.bf16.gmra.mrb[0].mxu0 %v1447
        %v1498 = vpop.f32.mrb[0].mxu0
        %v1499 = vadd.f32 0.0, %v1498
        %v1500 = vpop.f32.mrb[0].mxu0
        %v1501 = vpop.f32.mrb[0].mxu0
        %v1502 = vadd.f32 0.0, %v1501
        %v1503 = vpop.f32.mrb[0].mxu0
        %1504 = vmatprep.mubr.bf16.mxu0 0
        %1505 = vmatmul.mubr.bf16.gmra.mrb[0].mxu0 %v1450
        %v1506 = vpop.f32.mrb[0].mxu0
        %v1507 = vadd.f32 0.0, %v1506
        %v1508 = vpop.f32.mrb[0].mxu0
        %v1509 = vpop.f32.mrb[0].mxu0
        %v1510 = vadd.f32 0.0, %v1509
        %v1511 = vpop.f32.mrb[0].mxu0
        %1512 = vmatprep.mubr.bf16.mxu0 0
        %1513 = vmatmul.mubr.bf16.gmra.mrb[0].mxu0 %v1453
        %v1514 = vpop.f32.mrb[0].mxu0
        %v1515 = vadd.f32 0.0, %v1514
        %v1516 = vpop.f32.mrb[0].mxu0
        %v1517 = vpop.f32.mrb[0].mxu0
        %v1518 = vadd.f32 0.0, %v1517
        %v1519 = vpop.f32.mrb[0].mxu0
        %1520 = vmatprep.mubr.bf16.mxu0 0
        %1521 = vmatmul.mubr.bf16.gmra.mrb[0].mxu0 %v1456
        %v1522 = vpop.f32.mrb[0].mxu0
        %v1523 = vadd.f32 0.0, %v1522
        %v1524 = vpop.f32.mrb[0].mxu0
        %v1525 = vpop.f32.mrb[0].mxu0
        %v1526 = vadd.f32 0.0, %v1525
        %v1527 = vpop.f32.mrb[0].mxu0
        %1528 = vmatprep.mubr.bf16.mxu0 0
        %1529 = vmatmul.mubr.bf16.gmra.mrb[0].mxu0 %v1459
        %v1530 = vpop.f32.mrb[0].mxu0
        %v1531 = vadd.f32 0.0, %v1530
        %v1532 = vpop.f32.mrb[0].mxu0
        %v1533 = vpop.f32.mrb[0].mxu0
        %v1534 = vadd.f32 0.0, %v1533
        %v1535 = vpop.f32.mrb[0].mxu0
        %1536 = vdwg.mxu0
        %v1537 = vld [vmem:[%s384] sm:$0xff]
        %v1538 = vld [vmem:[%s384 + $0x8] sm:$0xff]
        %v1539 = vld [vmem:[%s384 + $0x10] sm:$0xff]
        %v1540 = vld [vmem:[%s384 + $0x18] sm:$0xff]
        %v1541 = vld [vmem:[%s384 + $0x20] sm:$0xff]
        %v1542 = vld [vmem:[%s384 + $0x28] sm:$0xff]
        %v1543 = vld [vmem:[%s384 + $0x30] sm:$0xff]
        %v1544 = vld [vmem:[%s384 + $0x38] sm:$0xff]
        %v1545 = vld [vmem:[%s384 + $0x40] sm:$0xff]
        %v1546 = vld [vmem:[%s384 + $0x48] sm:$0xff]
        %v1547 = vadd.f32 %v1537, %v1499
        %v1548 = vadd.f32 %v1538, %v1502
        %v1549 = vadd.f32 %v1539, %v1507
        %v1550 = vadd.f32 %v1540, %v1510
        %v1551 = vadd.f32 %v1541, %v1515
        %v1552 = vadd.f32 %v1542, %v1518
        %v1553 = vadd.f32 %v1543, %v1523
        %v1554 = vadd.f32 %v1544, %v1526
        %v1555 = vadd.f32 %v1545, %v1531
        %v1556 = vadd.f32 %v1546, %v1534
        %1557 = vst.msk [vmem:[%s384] sm:$0xff] %vm590, %v1547
        %1558 = vst.msk [vmem:[%s384 + $0x8] sm:$0xff] %vm590, %v1548
        %1559 = vst.msk [vmem:[%s384 + $0x10] sm:$0xff] %vm590, %v1549
        %1560 = vst.msk [vmem:[%s384 + $0x18] sm:$0xff] %vm590, %v1550
        %1561 = vst.msk [vmem:[%s384 + $0x20] sm:$0xff] %vm590, %v1551
        %1562 = vst.msk [vmem:[%s384 + $0x28] sm:$0xff] %vm590, %v1552
        %1563 = vst.msk [vmem:[%s384 + $0x30] sm:$0xff] %vm590, %v1553
        %1564 = vst.msk [vmem:[%s384 + $0x38] sm:$0xff] %vm590, %v1554
        %1565 = vst.msk [vmem:[%s384 + $0x40] sm:$0xff] %vm590, %v1555
        %1566 = vst.msk [vmem:[%s384 + $0x48] sm:$0xff] %vm590, %v1556
        %v1567 = vld [vmem:[#allocation2 + $0x16] sm:$0xff]
        %v1568 = vld [vmem:[#allocation2 + $0x1e] sm:$0xff]
        %v1569 = vld [vmem:[#allocation2 + $0x26] sm:$0xff]
        %v1570 = vld [vmem:[#allocation2 + $0x2e] sm:$0xff]
        %v1571 = vld [vmem:[#allocation2 + $0x36] sm:$0xff]
        %v1572 = vld [vmem:[#allocation2 + $0x3e] sm:$0xff]
        %v1573 = vld [vmem:[#allocation2 + $0x46] sm:$0xff]
        %v1574 = vld [vmem:[#allocation2 + $0x4e] sm:$0xff]
        %v1575 = vld [vmem:[#allocation2 + $0x56] sm:$0xff]
        %v1576 = vld [vmem:[#allocation2 + $0x5e] sm:$0xff]
        %v1577 = vpack.c.bf16 %v1568, %v1567
        %v1578 = vpack.c.bf16 %v1570, %v1569
        %v1579 = vpack.c.bf16 %v1572, %v1571
        %v1580 = vpack.c.bf16 %v1574, %v1573
        %v1581 = vpack.c.bf16 %v1576, %v1575
        %s1582 = scalar_lea.vmem %s4, 16
        %v1583 = vld [vmem:[%s1582] sm:$0x3]
        %v1585 = vsel %vm466, %v1577, 0
        %v1588 = vsel %vm466, %v1578, 0
        %v1591 = vsel %vm466, %v1579, 0
        %v1594 = vsel %vm466, %v1580, 0
        %v1597 = vsel %vm466, %v1581, 0
        %v1600 = vsel %vm513, %v1583, 0
        %1602 = vmatprep.subr.bf16.mxu0 0
        %1603 = vmatpush1.bf16.msra.mxu0 %v1600
        %1604 = vmatprep.subr.bf16.mxu0 0
        %1605 = vmatpush1.bf16.msra.mxu0 0
        %1606 = vmatprep.subr.bf16.mxu0 0
        %1607 = vmatpush1.bf16.msra.mxu0 0
        %1608 = vmatprep.subr.bf16.mxu0 0
        %1609 = vmatpush1.bf16.msra.mxu0 0
        %1610 = vmatprep.subr.bf16.mxu0 0
        %1611 = vmatpush1.bf16.msra.mxu0 0
        %1612 = vmatprep.subr.bf16.mxu0 0
        %1613 = vmatpush1.bf16.msra.mxu0 0
        %1614 = vmatprep.subr.bf16.mxu0 0
        %1615 = vmatpush1.bf16.msra.mxu0 0
        %1616 = vmatprep.subr.bf16.mxu0 0
        %1617 = vmatpush1.bf16.msra.mxu0 0
        %1618 = vmatprep.subr.bf16.mxu0 0
        %1619 = vmatpush1.bf16.msra.mxu0 0
        %1620 = vmatprep.subr.bf16.mxu0 0
        %1621 = vmatpush1.bf16.msra.mxu0 0
        %1622 = vmatprep.subr.bf16.mxu0 0
        %1623 = vmatpush1.bf16.msra.mxu0 0
        %1624 = vmatprep.subr.bf16.mxu0 0
        %1625 = vmatpush1.bf16.msra.mxu0 0
        %1626 = vmatprep.subr.bf16.mxu0 0
        %1627 = vmatpush1.bf16.msra.mxu0 0
        %1628 = vmatprep.subr.bf16.mxu0 0
        %1629 = vmatpush1.bf16.msra.mxu0 0
        %1630 = vmatprep.subr.bf16.mxu0 0
        %1631 = vmatpush1.bf16.msra.mxu0 0
        %1632 = vmatprep.subr.bf16.mxu0 0
        %1633 = vmatpush1.bf16.msra.mxu0 0
        %1634 = vmatprep.mubr.bf16.mxu0 0
        %1635 = vmatmul.mubr.bf16.gmra.mrb[0].mxu0 %v1585
        %v1636 = vpop.f32.mrb[0].mxu0
        %v1637 = vadd.f32 0.0, %v1636
        %v1638 = vpop.f32.mrb[0].mxu0
        %v1639 = vpop.f32.mrb[0].mxu0
        %v1640 = vadd.f32 0.0, %v1639
        %v1641 = vpop.f32.mrb[0].mxu0
        %1642 = vmatprep.mubr.bf16.mxu0 0
        %1643 = vmatmul.mubr.bf16.gmra.mrb[0].mxu0 %v1588
        %v1644 = vpop.f32.mrb[0].mxu0
        %v1645 = vadd.f32 0.0, %v1644
        %v1646 = vpop.f32.mrb[0].mxu0
        %v1647 = vpop.f32.mrb[0].mxu0
        %v1648 = vadd.f32 0.0, %v1647
        %v1649 = vpop.f32.mrb[0].mxu0
        %1650 = vmatprep.mubr.bf16.mxu0 0
        %1651 = vmatmul.mubr.bf16.gmra.mrb[0].mxu0 %v1591
        %v1652 = vpop.f32.mrb[0].mxu0
        %v1653 = vadd.f32 0.0, %v1652
        %v1654 = vpop.f32.mrb[0].mxu0
        %v1655 = vpop.f32.mrb[0].mxu0
        %v1656 = vadd.f32 0.0, %v1655
        %v1657 = vpop.f32.mrb[0].mxu0
        %1658 = vmatprep.mubr.bf16.mxu0 0
        %1659 = vmatmul.mubr.bf16.gmra.mrb[0].mxu0 %v1594
        %v1660 = vpop.f32.mrb[0].mxu0
        %v1661 = vadd.f32 0.0, %v1660
        %v1662 = vpop.f32.mrb[0].mxu0
        %v1663 = vpop.f32.mrb[0].mxu0
        %v1664 = vadd.f32 0.0, %v1663
        %v1665 = vpop.f32.mrb[0].mxu0
        %1666 = vmatprep.mubr.bf16.mxu0 0
        %1667 = vmatmul.mubr.bf16.gmra.mrb[0].mxu0 %v1597
        %v1668 = vpop.f32.mrb[0].mxu0
        %v1669 = vadd.f32 0.0, %v1668
        %v1670 = vpop.f32.mrb[0].mxu0
        %v1671 = vpop.f32.mrb[0].mxu0
        %v1672 = vadd.f32 0.0, %v1671
        %v1673 = vpop.f32.mrb[0].mxu0
        %1674 = vdwg.mxu0
        %v1675 = vld [vmem:[%s384] sm:$0xff]
        %v1676 = vld [vmem:[%s384 + $0x8] sm:$0xff]
        %v1677 = vld [vmem:[%s384 + $0x10] sm:$0xff]
        %v1678 = vld [vmem:[%s384 + $0x18] sm:$0xff]
        %v1679 = vld [vmem:[%s384 + $0x20] sm:$0xff]
        %v1680 = vld [vmem:[%s384 + $0x28] sm:$0xff]
        %v1681 = vld [vmem:[%s384 + $0x30] sm:$0xff]
        %v1682 = vld [vmem:[%s384 + $0x38] sm:$0xff]
        %v1683 = vld [vmem:[%s384 + $0x40] sm:$0xff]
        %v1684 = vld [vmem:[%s384 + $0x48] sm:$0xff]
        %v1685 = vadd.f32 %v1675, %v1637
        %v1686 = vadd.f32 %v1676, %v1640
        %v1687 = vadd.f32 %v1677, %v1645
        %v1688 = vadd.f32 %v1678, %v1648
        %v1689 = vadd.f32 %v1679, %v1653
        %v1690 = vadd.f32 %v1680, %v1656
        %v1691 = vadd.f32 %v1681, %v1661
        %v1692 = vadd.f32 %v1682, %v1664
        %v1693 = vadd.f32 %v1683, %v1669
        %v1694 = vadd.f32 %v1684, %v1672
        %1695 = vst.msk [vmem:[%s384] sm:$0xff] %vm590, %v1685
        %1696 = vst.msk [vmem:[%s384 + $0x8] sm:$0xff] %vm590, %v1686
        %1697 = vst.msk [vmem:[%s384 + $0x10] sm:$0xff] %vm590, %v1687
        %1698 = vst.msk [vmem:[%s384 + $0x18] sm:$0xff] %vm590, %v1688
        %1699 = vst.msk [vmem:[%s384 + $0x20] sm:$0xff] %vm590, %v1689
        %1700 = vst.msk [vmem:[%s384 + $0x28] sm:$0xff] %vm590, %v1690
        %1701 = vst.msk [vmem:[%s384 + $0x30] sm:$0xff] %vm590, %v1691
        %1702 = vst.msk [vmem:[%s384 + $0x38] sm:$0xff] %vm590, %v1692
        %1703 = vst.msk [vmem:[%s384 + $0x40] sm:$0xff] %vm590, %v1693
        %1704 = vst.msk [vmem:[%s384 + $0x48] sm:$0xff] %vm590, %v1694
        %v1705 = vld [vmem:[%s384] sm:$0xff]
        %v1706 = vld [vmem:[%s384 + $0x8] sm:$0xff]
        %v1707 = vld [vmem:[%s384 + $0x10] sm:$0xff]
        %v1708 = vld [vmem:[%s384 + $0x18] sm:$0xff]
        %v1709 = vld [vmem:[%s384 + $0x20] sm:$0xff]
        %v1710 = vld [vmem:[%s384 + $0x28] sm:$0xff]
        %v1711 = vld [vmem:[%s384 + $0x30] sm:$0xff]
        %v1712 = vld [vmem:[%s384 + $0x38] sm:$0xff]
        %v1713 = vld [vmem:[%s384 + $0x40] sm:$0xff]
        %v1714 = vld [vmem:[%s384 + $0x48] sm:$0xff]
        %v1715 = vld [vmem:[%s5] sm:$0xff]
        %v1716 = vld [vmem:[%s5 + $0x8] sm:$0xff]
        %v1717 = vld [vmem:[%s5 + $0x10] sm:$0xff]
        %v1718 = vld [vmem:[%s5 + $0x18] sm:$0xff]
        %v1719 = vld [vmem:[%s5 + $0x20] sm:$0xff]
        %v1720 = vld [vmem:[%s5 + $0x28] sm:$0xff]
        %v1721 = vld [vmem:[%s5 + $0x30] sm:$0xff]
        %v1722 = vld [vmem:[%s5 + $0x38] sm:$0xff]
        %v1723 = vld [vmem:[%s5 + $0x40] sm:$0xff]
        %v1724 = vld [vmem:[%s5 + $0x48] sm:$0xff]
        %1726 = vset.pattern.permute.xlu0 0
        %1727 = vperm.xlu0 %1726, %v1715
        %v1728 = vpop.permute.xlu0 %1727
        %1731 = vset.pattern.permute.xlu0 0
        %1732 = vperm.xlu0 %1731, %v1716
        %v1733 = vpop.permute.xlu0 %1732
        %1736 = vset.pattern.permute.xlu0 0
        %1737 = vperm.xlu0 %1736, %v1717
        %v1738 = vpop.permute.xlu0 %1737
        %1741 = vset.pattern.permute.xlu0 0
        %1742 = vperm.xlu0 %1741, %v1718
        %v1743 = vpop.permute.xlu0 %1742
        %1746 = vset.pattern.permute.xlu0 0
        %1747 = vperm.xlu0 %1746, %v1719
        %v1748 = vpop.permute.xlu0 %1747
        %1751 = vset.pattern.permute.xlu0 0
        %1752 = vperm.xlu0 %1751, %v1720
        %v1753 = vpop.permute.xlu0 %1752
        %1756 = vset.pattern.permute.xlu0 0
        %1757 = vperm.xlu0 %1756, %v1721
        %v1758 = vpop.permute.xlu0 %1757
        %1761 = vset.pattern.permute.xlu0 0
        %1762 = vperm.xlu0 %1761, %v1722
        %v1763 = vpop.permute.xlu0 %1762
        %1766 = vset.pattern.permute.xlu0 0
        %1767 = vperm.xlu0 %1766, %v1723
        %v1768 = vpop.permute.xlu0 %1767
        %1771 = vset.pattern.permute.xlu0 0
        %1772 = vperm.xlu0 %1771, %v1724
        %v1773 = vpop.permute.xlu0 %1772
        %v1775 = vmul.f32 %v1705, %v1728
        %v1776 = vmul.f32 %v1706, %v1733
        %v1777 = vmul.f32 %v1707, %v1738
        %v1778 = vmul.f32 %v1708, %v1743
        %v1779 = vmul.f32 %v1709, %v1748
        %v1780 = vmul.f32 %v1710, %v1753
        %v1781 = vmul.f32 %v1711, %v1758
        %v1782 = vmul.f32 %v1712, %v1763
        %v1783 = vmul.f32 %v1713, %v1768
        %v1784 = vmul.f32 %v1714, %v1773
        %v1785 = vsel %vm590, %v1775, 0.0
        %v1786 = vsel %vm590, %v1776, 0.0
        %v1787 = vadd.f32 %v1785, %v1786
        %v1788 = vsel %vm590, %v1777, 0.0
        %v1789 = vadd.f32 %v1787, %v1788
        %v1790 = vsel %vm590, %v1778, 0.0
        %v1791 = vadd.f32 %v1789, %v1790
        %v1792 = vsel %vm590, %v1779, 0.0
        %v1793 = vadd.f32 %v1791, %v1792
        %v1794 = vsel %vm590, %v1780, 0.0
        %v1795 = vadd.f32 %v1793, %v1794
        %v1796 = vsel %vm590, %v1781, 0.0
        %v1797 = vadd.f32 %v1795, %v1796
        %v1798 = vsel %vm590, %v1782, 0.0
        %v1799 = vadd.f32 %v1797, %v1798
        %v1800 = vsel %vm590, %v1783, 0.0
        %v1801 = vadd.f32 %v1799, %v1800
        %v1802 = vsel %vm590, %v1784, 0.0
        %v1803 = vadd.f32 %v1801, %v1802
        %v1804 = vrot.slane %v1803, 4
        %v1805 = vadd.f32 %v1803, %v1804
        %v1806 = vrot.slane %v1805, 2
        %v1807 = vadd.f32 %v1805, %v1806
        %v1808 = vrot.slane %v1807, 1
        %v1809 = vadd.f32 %v1807, %v1808
        %vm1810 = vcmask 57344
        %1811 = vst.msk [vmem:[%s353] sm:$0x1] %vm1810, %v1809
        %v1812 = vmul.f32 %v1775, %v1775
        %v1813 = vmul.f32 %v1776, %v1776
        %v1814 = vmul.f32 %v1777, %v1777
        %v1815 = vmul.f32 %v1778, %v1778
        %v1816 = vmul.f32 %v1779, %v1779
        %v1817 = vmul.f32 %v1780, %v1780
        %v1818 = vmul.f32 %v1781, %v1781
        %v1819 = vmul.f32 %v1782, %v1782
        %v1820 = vmul.f32 %v1783, %v1783
        %v1821 = vmul.f32 %v1784, %v1784
        %v1822 = vsel %vm590, %v1812, 0.0
        %v1823 = vsel %vm590, %v1813, 0.0
        %v1824 = vadd.f32 %v1822, %v1823
        %v1825 = vsel %vm590, %v1814, 0.0
        %v1826 = vadd.f32 %v1824, %v1825
        %v1827 = vsel %vm590, %v1815, 0.0
        %v1828 = vadd.f32 %v1826, %v1827
        %v1829 = vsel %vm590, %v1816, 0.0
        %v1830 = vadd.f32 %v1828, %v1829
        %v1831 = vsel %vm590, %v1817, 0.0
        %v1832 = vadd.f32 %v1830, %v1831
        %v1833 = vsel %vm590, %v1818, 0.0
        %v1834 = vadd.f32 %v1832, %v1833
        %v1835 = vsel %vm590, %v1819, 0.0
        %v1836 = vadd.f32 %v1834, %v1835
        %v1837 = vsel %vm590, %v1820, 0.0
        %v1838 = vadd.f32 %v1836, %v1837
        %v1839 = vsel %vm590, %v1821, 0.0
        %v1840 = vadd.f32 %v1838, %v1839
        %v1841 = vrot.slane %v1840, 4
        %v1842 = vadd.f32 %v1840, %v1841
        %v1843 = vrot.slane %v1842, 2
        %v1844 = vadd.f32 %v1842, %v1843
        %v1845 = vrot.slane %v1844, 1
        %v1846 = vadd.f32 %v1844, %v1845
        %1847 = vst.msk [vmem:[%s359] sm:$0x1] %vm1810, %v1846
        %p1848 = scmp.lt.s32.totalorder %s26, 1
        %s1849 = scalar_select %p1848, %s26, 1
        %s1850 = smul.addr %s1849, 10
        %s1851 = smul.addr %s1850, 8
        %s1852 = scalar_lea.vmem %s6, %s1851
        %s1853 = sand.u32 %s206, 1
        %s1854 = scalar_lea.sflag [#allocation4], %s1853
        %s1855 = sand.u32 %s206, 1
        %s1856 = scalar_lea.vmem [#allocation3], %s1855
        %s1857 = sand.u32 %s232, 1
        %s1858 = scalar_lea.sflag [#allocation6], %s1857
        %s1859 = sand.u32 %s232, 1
        %s1860 = scalar_lea.vmem [#allocation5], %s1859
        // Predicated region
        $region45: #{tpu_custom_call.1} parent=43 // pred_check
          %p1861 = pneg %p190
        $region46: #{tpu_custom_call.1} parent=43 // pred_check_branch
          %1863 = sbr.rel (%p1861) target = $region48
        $region47: #{tpu_custom_call.1} parent=43 // pred_region
          _
        $region48: #{tpu_custom_call.1} parent=43 // pred_fallthru
          _
        // Predicated region
        $region49: #{tpu_custom_call.1} parent=43 // pred_check
          %p1864 = pneg %p216
        $region50: #{tpu_custom_call.1} parent=43 // pred_check_branch
          %1866 = sbr.rel (%p1864) target = $region52
        $region51: #{tpu_custom_call.1} parent=43 // pred_region
          %s1868 = ssub.s32 16, 16
          %1869 = vsyncadd %s1854, %s1868
          %s1870 = smul.addr %s26, 16
          %s1871 = scalar_lea.hbm %s7, %s1870
          %s1873 = sshll.u32 %s1856, 4
          %s1874 = int_to_ptr.vmem [resolvable:$true] %s1873
          %1876 = dma.vmem_to_hbm [thread:$0]  %s1874, 16, %s1871, %s1854
        $region52: #{tpu_custom_call.1} parent=43 // pred_fallthru
          _
        // Predicated region
        $region53: #{tpu_custom_call.1} parent=43 // pred_check
          %p1877 = pneg %p242
        $region54: #{tpu_custom_call.1} parent=43 // pred_check_branch
          %1879 = sbr.rel (%p1877) target = $region56
        $region55: #{tpu_custom_call.1} parent=43 // pred_region
          %s1881 = ssub.s32 16, 16
          %1882 = vsyncadd %s1858, %s1881
          %s1883 = smul.addr %s26, 16
          %s1884 = scalar_lea.hbm %s8, %s1883
          %s1886 = sshll.u32 %s1860, 4
          %s1887 = int_to_ptr.vmem [resolvable:$true] %s1886
          %1889 = dma.vmem_to_hbm [thread:$0]  %s1887, 16, %s1884, %s1858
        $region56: #{tpu_custom_call.1} parent=43 // pred_fallthru
          _
      $region44: #{tpu_custom_call.1} parent=5 // pred_fallthru
        _
      %p1890 = scmp.le.s32.totalorder 2, %s21
      // Predicated region
      $region57: #{tpu_custom_call.1} parent=5 // pred_check
        %p1891 = pneg %p1890
      $region58: #{tpu_custom_call.1} parent=5 // pred_check_branch
        %1893 = sbr.rel (%p1891) target = $region60
      $region59: #{tpu_custom_call.1} parent=5 // pred_region
        %s1894 = ssub.s32 %s21, 2
        // Predicated region
        $region61: #{tpu_custom_call.1} parent=59 // pred_check
          %p1895 = pneg %p196
        $region62: #{tpu_custom_call.1} parent=59 // pred_check_branch
          %1897 = sbr.rel (%p1895) target = $region64
        $region63: #{tpu_custom_call.1} parent=59 // pred_region
          %p1898 = scmp.lt.s32.totalorder %s27, 1
          %s1899 = scalar_select %p1898, %s27, 1
          %s1900 = smul.addr %s1899, 10
          %s1901 = smul.addr %s1900, 8
          %s1902 = scalar_lea.vmem %s6, %s1901
        $region64: #{tpu_custom_call.1} parent=59 // pred_fallthru
          _
        // Predicated region
        $region65: #{tpu_custom_call.1} parent=59 // pred_check
          %p1903 = pneg %p222
        $region66: #{tpu_custom_call.1} parent=59 // pred_check_branch
          %1905 = sbr.rel (%p1903) target = $region68
        $region67: #{tpu_custom_call.1} parent=59 // pred_region
          %s1906 = sand.u32 %s207, 1
          %s1907 = scalar_lea.sflag [#allocation4], %s1906
          %s1908 = sand.u32 %s207, 1
          %s1909 = scalar_lea.vmem [#allocation3], %s1908
          %1910 = dma.done %s1907, 16
        $region68: #{tpu_custom_call.1} parent=59 // pred_fallthru
          _
        // Predicated region
        $region69: #{tpu_custom_call.1} parent=59 // pred_check
          %p1911 = pneg %p248
        $region70: #{tpu_custom_call.1} parent=59 // pred_check_branch
          %1913 = sbr.rel (%p1911) target = $region72
        $region71: #{tpu_custom_call.1} parent=59 // pred_region
          %s1914 = sand.u32 %s233, 1
          %s1915 = scalar_lea.sflag [#allocation6], %s1914
          %s1916 = sand.u32 %s233, 1
          %s1917 = scalar_lea.vmem [#allocation5], %s1916
          %1918 = dma.done %s1915, 16
        $region72: #{tpu_custom_call.1} parent=59 // pred_fallthru
          _
      $region60: #{tpu_custom_call.1} parent=5 // pred_fallthru
        _
    $region6: #{tpu_custom_call.1} parent=1 // loop_footer
      %s25 = sadd.s32 1, %s21
    $region7: #{tpu_custom_call.1} parent=1 // loop_footer_branch
      %20 = sbr.rel target = $region3
    $region8: #{tpu_custom_call.1} parent=1 // loop_exit
      _
    %1919 = vsyncpa [#allocation4], 1
    %s1920 = scalar_lea.sflag [#allocation4], 1
    %1921 = vsyncpa %s1920, 1
    %1922 = vsyncpa [#allocation6], 1
    %s1923 = scalar_lea.sflag [#allocation6], 1
    %1924 = vsyncpa %s1923, 1

</llo_original>
